<compile_context>
chip_gen: v7x
topology: tpu7x:2x2x1
jax: 0.10.0
libtpu: 0.0.40
codegen_flags: <defaults>
</compile_context>

<pallas_src>
import functools

import jax
import jax.numpy as jnp
from jax.experimental import pallas as pl
from jax.experimental.pallas import tpu as pltpu


# ----------------------------- Pallas kernel -------------------------------

def _apply_activation(y, activation):
    if activation == "relu":
        return jnp.maximum(y, 0.0)
    if activation == "tanh":
        return jnp.tanh(y)
    if activation == "silu":
        return y * jax.nn.sigmoid(y)
    return y  # identity / None.  Dropout: identity in eval mode.


def _kan_cell_kernel(x_ref, h0_ref,
                     cin_ref, kin_ref, sin_ref,
                     chid_ref, khid_ref, shid_ref,
                     o_ref, *, seq_len, cfg_in, cfg_hid):
    B, H = h0_ref.shape
    T = seq_len
    K_in, K_hid = cfg_in["n_knots"], cfg_hid["n_knots"]
    inv_in = float(K_in - 1) / float(cfg_in["x_max"] - cfg_in["x_min"])
    inv_hid = float(K_hid - 1) / float(cfg_hid["x_max"] - cfg_hid["x_min"])

    # ---- Input block hoisted out of the recurrence: one MXU pass for all T ----
    xz = jnp.clip(x_ref[...], cfg_in["x_min"], cfg_in["x_max"])        # (T*B, Din)
    xw = jnp.concatenate([xz] * K_in, axis=1)                           # (T*B, K_in*Din)
    basis_in = jnp.maximum(0.0, 1.0 - jnp.abs(xw - kin_ref[...]) * inv_in)
    i2h_all = jnp.dot(basis_in, cin_ref[...],
                      preferred_element_type=jnp.float32)               # (T*B, H)
    i2h_all = _apply_activation(i2h_all + sin_ref[...], cfg_in["activation"])

    # ---- Hidden-block constants: broadcast ONCE, outside the time loop -------
    khid_b = jnp.broadcast_to(khid_ref[...], (B, K_hid * H))
    shid_b = jnp.broadcast_to(shid_ref[...], (B, H))

    # ---- Serial recurrence, fully unrolled (T static & small) ----------------
    h = h0_ref[...]
    outs = []
    for t in range(T):
        hz = jnp.clip(h, cfg_hid["x_min"], cfg_hid["x_max"])            # (B, H)
        hw = jnp.concatenate([hz] * K_hid, axis=1)                      # (B, K_hid*H)
        basis_h = jnp.maximum(0.0, 1.0 - jnp.abs(hw - khid_b) * inv_hid)
        y = jnp.dot(basis_h, chid_ref[...],
                    preferred_element_type=jnp.float32) + shid_b        # one MXU pass
        h2h = _apply_activation(y, cfg_hid["activation"])
        h = jnp.tanh(i2h_all[t * B:(t + 1) * B, :] + h2h)
        outs.append(h)

    # Single lane-dense (B, T*H) slab store instead of T masked per-step stores.
    o_ref[...] = jnp.concatenate(outs, axis=1)


# ------------------------------ JAX wrappers ---------------------------------

def kan_rnn_forward(x_seq, h0, params, cfg_in, cfg_hid):
    """Run T recurrent KAN_Cell steps inside a single pallas_call invocation."""
    T, B, Din = x_seq.shape
    H = h0.shape[1]
    K_in, K_hid = cfg_in["n_knots"], cfg_hid["n_knots"]

    # Fold time into rows so the hoisted input-block matmul covers the sequence.
    x_flat = x_seq.reshape(T * B, Din)

    kernel = functools.partial(_kan_cell_kernel, seq_len=T,
                               cfg_in=cfg_in, cfg_hid=cfg_hid)

    def full(shape):
        n = len(shape)
        return pl.BlockSpec(shape, lambda *_: (0,) * n)   # full array, resident

    flops = 2 * T * B * H * (K_in * Din + K_hid * H)
    transcendentals = 2 * T * B * H            # hidden-block tanh + output tanh
    bytes_accessed = 4 * (x_flat.size + h0.size + T * B * H
                          + K_in * Din * H + K_hid * H * H
                          + K_in * Din + K_hid * H + 2 * H)

    out = pl.pallas_call(
        kernel,
        grid=(1,),   # single invocation; recurrence handled in-kernel
        out_shape=jax.ShapeDtypeStruct((B, T * H), jnp.float32),
        in_specs=[
            full((T * B, Din)),                              # x (all timesteps)
            full((B, H)),                                    # h0
            full((K_in * Din, H)), full((1, K_in * Din)), full((1, H)),
            full((K_hid * H, H)),  full((1, K_hid * H)),  full((1, H)),
        ],
        out_specs=full((B, T * H)),
        compiler_params=pltpu.CompilerParams(
            dimension_semantics=("arbitrary",)),
        cost_estimate=pl.CostEstimate(flops=flops,
                                      transcendentals=transcendentals,
                                      bytes_accessed=bytes_accessed),
    )(x_flat, h0,
      params["coeff_in2d_s"], params["knots_in"], params["shift_in_fold"],
      params["coeff_hid2d_s"], params["knots_hid"], params["shift_hid_fold"])

    # (B, T*H) lane-dense slab -> (T, B, H)
    return out.reshape(B, T, H).transpose(1, 0, 2)


def kan_cell_forward(x_t, h_prev, params, cfg_in, cfg_hid):
    """Single-step KAN_Cell (matches the PyTorch module's forward signature)."""
    return kan_rnn_forward(x_t[None], h_prev, params, cfg_in, cfg_hid)[0]


# ----------------------- deterministic parameter init -----------------------

def init_params(key, input_dim, hidden_dim, cfg_in, cfg_hid):
    k = jax.random.split(key, 6)
    K_in, K_hid = cfg_in["n_knots"], cfg_hid["n_knots"]

    def knot_row(cfg, d):
        K = cfg["n_knots"]
        step = (cfg["x_max"] - cfg["x_min"]) / (K - 1)
        knots = cfg["x_min"] + step * jnp.arange(K, dtype=jnp.float32)
        return jnp.repeat(knots, d)[None, :]      # column k*d+i -> knot t_k

    def bn_affine(use_bn, kk, dim):
        if not use_bn:
            return jnp.ones((1, dim), jnp.float32), jnp.zeros((1, dim), jnp.float32)
        # eval-mode BN with deterministic non-trivial gamma/beta/running stats.
        gamma = 1.0 + 0.05 * jax.random.normal(kk, (1, dim), jnp.float32)
        beta = 0.01 * jnp.arange(dim, dtype=jnp.float32)[None, :]
        run_mean = jnp.zeros((1, dim), jnp.float32)
        run_var = jnp.ones((1, dim), jnp.float32)
        eps = 1e-5
        scale = gamma / jnp.sqrt(run_var + eps)
        shift = beta - run_mean * scale
        return scale, shift

    coeff_in = 0.1 * jax.random.normal(k[0], (K_in, input_dim, hidden_dim), jnp.float32)
    bias_in = 0.1 * jax.random.normal(k[1], (1, hidden_dim), jnp.float32)
    coeff_hid = 0.1 * jax.random.normal(k[2], (K_hid, hidden_dim, hidden_dim), jnp.float32)
    bias_hid = 0.1 * jax.random.normal(k[3], (1, hidden_dim), jnp.float32)

    scale_in, shift_in = bn_affine(cfg_in["use_bn"], k[4], hidden_dim)
    scale_hid, shift_hid = bn_affine(cfg_hid["use_bn"], k[5], hidden_dim)

    return {
        # reference-layout params
        "coeff_in": coeff_in, "bias_in": bias_in,
        "coeff_hid": coeff_hid, "bias_hid": bias_hid,
        "scale_in": scale_in, "shift_in": shift_in,
        "scale_hid": scale_hid, "shift_hid": shift_hid,
        # kernel-layout params: knot axis folded into the contraction dim,
        # BN scale folded into coefficient columns, KAN bias + BN shift folded
        # into a single per-feature add (all done once in f32 on the host).
        "coeff_in2d_s": coeff_in.reshape(K_in * input_dim, hidden_dim) * scale_in,
        "coeff_hid2d_s": coeff_hid.reshape(K_hid * hidden_dim, hidden_dim) * scale_hid,
        "knots_in": knot_row(cfg_in, input_dim),
        "knots_hid": knot_row(cfg_hid, hidden_dim),
        "shift_in_fold": bias_in * scale_in + shift_in,
        "shift_hid_fold": bias_hid * scale_hid + shift_hid,
    }


# --------------------------- pure-JAX reference ------------------------------

def _ref_block(z, coeff, bias, scale, shift, cfg):
    K = cfg["n_knots"]
    x_min, x_max = cfg["x_min"], cfg["x_max"]
    inv_step = (K - 1) / (x_max - x_min)
    zc = jnp.clip(z, x_min, x_max)
    knots = x_min + (1.0 / inv_step) * jnp.arange(K, dtype=jnp.float32)
    basis = jnp.maximum(0.0, 1.0 - jnp.abs(zc[:, :, None] - knots[None, None, :]) * inv_step)
    y = jnp.einsum("bik,kio->bo", basis, coeff) + bias
    y = y * scale + shift
    act = cfg["activation"]
    if act == "relu":
        y = jnp.maximum(y, 0.0)
    elif act == "tanh":
        y = jnp.tanh(y)
    elif act == "silu":
        y = y * jax.nn.sigmoid(y)
    return y


def kan_cell_ref(x_t, h_prev, p, cfg_in, cfg_hid):
    i2h = _ref_block(x_t, p["coeff_in"], p["bias_in"], p["scale_in"], p["shift_in"], cfg_in)
    h2h = _ref_block(h_prev, p["coeff_hid"], p["bias_hid"], p["scale_hid"], p["shift_hid"], cfg_hid)
    return jnp.tanh(i2h + h2h)


def kan_rnn_ref(x_seq, h0, p, cfg_in, cfg_hid):
    outs = []
    h = h0
    for t in range(x_seq.shape[0]):
        h = kan_cell_ref(x_seq[t], h, p, cfg_in, cfg_hid)
        outs.append(h)
    return jnp.stack(outs, axis=0)


# ---------------------------------- main -------------------------------------

if __name__ == "__main__":
    input_dim, hidden_dim, batch, seq_len = 16, 32, 8, 8
    layer_configs = [
        {"n_knots": 8, "x_min": -2.0, "x_max": 2.0, "use_bn": True,
         "activation": "relu", "dropout": 0.1},
        {"n_knots": 6, "x_min": -1.0, "x_max": 1.0, "use_bn": False,
         "activation": "tanh", "dropout": 0.0},
    ]
    cfg_in, cfg_hid = layer_configs

    key = jax.random.PRNGKey(0)
    k_x, k_h, k_p = jax.random.split(key, 3)
    x_seq = jax.random.normal(k_x, (seq_len, batch, input_dim), jnp.float32)
    h0 = jax.random.normal(k_h, (batch, hidden_dim), jnp.float32)
    params = init_params(k_p, input_dim, hidden_dim, cfg_in, cfg_hid)

    # Fused multi-step recurrence (one pallas_call for all timesteps).
    h_seq = kan_rnn_forward(x_seq, h0, params, cfg_in, cfg_hid)
    h_seq = jax.block_until_ready(h_seq)
    h_seq_ref = kan_rnn_ref(x_seq, h0, params, cfg_in, cfg_hid)
    assert h_seq.shape == (seq_len, batch, hidden_dim)
    # Tolerance slightly loosened vs 1e-5: folding the BN scale into the
    # weights changes the f32 rounding order (mathematically exact).
    assert jnp.allclose(h_seq, h_seq_ref, atol=2e-5, rtol=2e-5), "sequence mismatch vs reference"

    # Single-step forward (the PyTorch module's forward signature).
    h1 = kan_cell_forward(x_seq[0], h0, params, cfg_in, cfg_hid)
    h1 = jax.block_until_ready(h1)
    assert jnp.allclose(h1, kan_cell_ref(x_seq[0], h0, params, cfg_in, cfg_hid),
                        atol=2e-5, rtol=2e-5), "single-step mismatch vs reference"

    print("KERNEL_OK")
</pallas_src>

<mosaic_0001>
module attributes {stable_mosaic.version = 11 : i64} {
  func.func @_kan_cell_kernel(%arg0: i32, %arg1: memref<64x16xf32, #tpu.memory_space<vmem>>, %arg2: memref<8x32xf32, #tpu.memory_space<vmem>>, %arg3: memref<128x32xf32, #tpu.memory_space<vmem>>, %arg4: memref<1x128xf32, #tpu.memory_space<vmem>>, %arg5: memref<1x32xf32, #tpu.memory_space<vmem>>, %arg6: memref<192x32xf32, #tpu.memory_space<vmem>>, %arg7: memref<1x192xf32, #tpu.memory_space<vmem>>, %arg8: memref<1x32xf32, #tpu.memory_space<vmem>>, %arg9: memref<8x256xf32, #tpu.memory_space<vmem>>) attributes {dimension_semantics = [#tpu.dimension_semantics<arbitrary>], iteration_bounds = array<i64: 1>, scalar_prefetch = 0 : i64, scratch_operands = 0 : i64, tpu.core_type = #tpu.core_type<tc>, window_params = [{pipeline_mode = #tpu.pipeline_mode<synchronous>, transform_indices = @transform_0, window_bounds = array<i64: 64, 16>}, {pipeline_mode = #tpu.pipeline_mode<synchronous>, transform_indices = @transform_1, window_bounds = array<i64: 8, 32>}, {pipeline_mode = #tpu.pipeline_mode<synchronous>, transform_indices = @transform_2, window_bounds = array<i64: 128, 32>}, {pipeline_mode = #tpu.pipeline_mode<synchronous>, transform_indices = @transform_3, window_bounds = array<i64: 1, 128>}, {pipeline_mode = #tpu.pipeline_mode<synchronous>, transform_indices = @transform_4, window_bounds = array<i64: 1, 32>}, {pipeline_mode = #tpu.pipeline_mode<synchronous>, transform_indices = @transform_5, window_bounds = array<i64: 192, 32>}, {pipeline_mode = #tpu.pipeline_mode<synchronous>, transform_indices = @transform_6, window_bounds = array<i64: 1, 192>}, {pipeline_mode = #tpu.pipeline_mode<synchronous>, transform_indices = @transform_7, window_bounds = array<i64: 1, 32>}, {pipeline_mode = #tpu.pipeline_mode<synchronous>, transform_indices = @transform_8, window_bounds = array<i64: 8, 256>}]} {
    %c0 = arith.constant 0 : index
    %c0_0 = arith.constant 0 : index
    %0 = vector.load %arg1[%c0, %c0_0] : memref<64x16xf32, #tpu.memory_space<vmem>>, vector<64x16xf32>
    %cst = arith.constant -2.000000e+00 : f32
    %cst_1 = arith.constant 2.000000e+00 : f32
    %1 = vector.broadcast %cst : f32 to vector<64x16xf32>
    %2 = arith.maximumf %1, %0 : vector<64x16xf32>
    %3 = vector.broadcast %cst_1 : f32 to vector<64x16xf32>
    %4 = arith.minimumf %3, %2 : vector<64x16xf32>
    %5 = tpu.concatenate %4, %4, %4, %4, %4, %4, %4, %4 in 1 : vector<64x16xf32>, vector<64x16xf32>, vector<64x16xf32>, vector<64x16xf32>, vector<64x16xf32>, vector<64x16xf32>, vector<64x16xf32>, vector<64x16xf32> -> vector<64x128xf32>
    %c0_2 = arith.constant 0 : index
    %c0_3 = arith.constant 0 : index
    %6 = vector.load %arg4[%c0_2, %c0_3] : memref<1x128xf32, #tpu.memory_space<vmem>>, vector<1x128xf32>
    %7 = vector.broadcast %6 : vector<1x128xf32> to vector<64x128xf32>
    %8 = arith.subf %5, %7 : vector<64x128xf32>
    %9 = math.absf %8 : vector<64x128xf32>
    %cst_4 = arith.constant 1.750000e+00 : f32
    %10 = vector.broadcast %cst_4 : f32 to vector<64x128xf32>
    %11 = arith.mulf %9, %10 : vector<64x128xf32>
    %cst_5 = arith.constant 1.000000e+00 : f32
    %12 = vector.broadcast %cst_5 : f32 to vector<64x128xf32>
    %13 = arith.subf %12, %11 : vector<64x128xf32>
    %cst_6 = arith.constant 0.000000e+00 : f32
    %14 = vector.broadcast %cst_6 : f32 to vector<64x128xf32>
    %15 = arith.maximumf %14, %13 : vector<64x128xf32>
    %c0_7 = arith.constant 0 : index
    %c0_8 = arith.constant 0 : index
    %16 = vector.load %arg3[%c0_7, %c0_8] : memref<128x32xf32, #tpu.memory_space<vmem>>, vector<128x32xf32>
    %cst_9 = arith.constant dense<0.000000e+00> : vector<64x32xf32>
    %17 = tpu.matmul %15, %16, %cst_9 {dimension_numbers = #tpu.dot_dimension_numbers<[1], [0], [0], [1], [0, 0, 1, 1], [], []>} : vector<64x128xf32>, vector<128x32xf32>, vector<64x32xf32> -> vector<64x32xf32>
    %c0_10 = arith.constant 0 : index
    %c0_11 = arith.constant 0 : index
    %18 = vector.load %arg5[%c0_10, %c0_11] : memref<1x32xf32, #tpu.memory_space<vmem>>, vector<1x32xf32>
    %19 = vector.broadcast %18 : vector<1x32xf32> to vector<64x32xf32>
    %20 = arith.addf %17, %19 : vector<64x32xf32>
    %cst_12 = arith.constant 0.000000e+00 : f32
    %21 = vector.broadcast %cst_12 : f32 to vector<64x32xf32>
    %22 = arith.maximumf %20, %21 : vector<64x32xf32>
    %c0_13 = arith.constant 0 : index
    %c0_14 = arith.constant 0 : index
    %23 = vector.load %arg7[%c0_13, %c0_14] : memref<1x192xf32, #tpu.memory_space<vmem>>, vector<1x192xf32>
    %24 = vector.shape_cast %23 : vector<1x192xf32> to vector<1x192xf32>
    %25 = vector.broadcast %24 : vector<1x192xf32> to vector<8x192xf32>
    %c0_15 = arith.constant 0 : index
    %c0_16 = arith.constant 0 : index
    %26 = vector.load %arg8[%c0_15, %c0_16] : memref<1x32xf32, #tpu.memory_space<vmem>>, vector<1x32xf32>
    %27 = vector.shape_cast %26 : vector<1x32xf32> to vector<1x32xf32>
    %28 = vector.broadcast %27 : vector<1x32xf32> to vector<8x32xf32>
    %c0_17 = arith.constant 0 : index
    %c0_18 = arith.constant 0 : index
    %29 = vector.load %arg2[%c0_17, %c0_18] : memref<8x32xf32, #tpu.memory_space<vmem>>, vector<8x32xf32>
    %cst_19 = arith.constant -1.000000e+00 : f32
    %cst_20 = arith.constant 1.000000e+00 : f32
    %30 = vector.broadcast %cst_19 : f32 to vector<8x32xf32>
    %31 = arith.maximumf %30, %29 : vector<8x32xf32>
    %32 = vector.broadcast %cst_20 : f32 to vector<8x32xf32>
    %33 = arith.minimumf %32, %31 : vector<8x32xf32>
    %34 = tpu.concatenate %33, %33, %33, %33, %33, %33 in 1 : vector<8x32xf32>, vector<8x32xf32>, vector<8x32xf32>, vector<8x32xf32>, vector<8x32xf32>, vector<8x32xf32> -> vector<8x192xf32>
    %35 = arith.subf %34, %25 : vector<8x192xf32>
    %36 = math.absf %35 : vector<8x192xf32>
    %cst_21 = arith.constant 2.500000e+00 : f32
    %37 = vector.broadcast %cst_21 : f32 to vector<8x192xf32>
    %38 = arith.mulf %36, %37 : vector<8x192xf32>
    %cst_22 = arith.constant 1.000000e+00 : f32
    %39 = vector.broadcast %cst_22 : f32 to vector<8x192xf32>
    %40 = arith.subf %39, %38 : vector<8x192xf32>
    %cst_23 = arith.constant 0.000000e+00 : f32
    %41 = vector.broadcast %cst_23 : f32 to vector<8x192xf32>
    %42 = arith.maximumf %41, %40 : vector<8x192xf32>
    %c0_24 = arith.constant 0 : index
    %c0_25 = arith.constant 0 : index
    %43 = vector.load %arg6[%c0_24, %c0_25] : memref<192x32xf32, #tpu.memory_space<vmem>>, vector<192x32xf32>
    %cst_26 = arith.constant dense<0.000000e+00> : vector<8x32xf32>
    %44 = tpu.matmul %42, %43, %cst_26 {dimension_numbers = #tpu.dot_dimension_numbers<[1], [0], [0], [1], [0, 0, 1, 1], [], []>} : vector<8x192xf32>, vector<192x32xf32>, vector<8x32xf32> -> vector<8x32xf32>
    %45 = arith.addf %44, %28 : vector<8x32xf32>
    %46 = math.tanh %45 : vector<8x32xf32>
    %47 = vector.extract_strided_slice %22 {offsets = [0, 0], sizes = [8, 32], strides = [1, 1]} : vector<64x32xf32> to vector<8x32xf32>
    %48 = arith.addf %47, %46 : vector<8x32xf32>
    %49 = math.tanh %48 : vector<8x32xf32>
    %cst_27 = arith.constant -1.000000e+00 : f32
    %cst_28 = arith.constant 1.000000e+00 : f32
    %50 = vector.broadcast %cst_27 : f32 to vector<8x32xf32>
    %51 = arith.maximumf %50, %49 : vector<8x32xf32>
    %52 = vector.broadcast %cst_28 : f32 to vector<8x32xf32>
    %53 = arith.minimumf %52, %51 : vector<8x32xf32>
    %54 = tpu.concatenate %53, %53, %53, %53, %53, %53 in 1 : vector<8x32xf32>, vector<8x32xf32>, vector<8x32xf32>, vector<8x32xf32>, vector<8x32xf32>, vector<8x32xf32> -> vector<8x192xf32>
    %55 = arith.subf %54, %25 : vector<8x192xf32>
    %56 = math.absf %55 : vector<8x192xf32>
    %cst_29 = arith.constant 2.500000e+00 : f32
    %57 = vector.broadcast %cst_29 : f32 to vector<8x192xf32>
    %58 = arith.mulf %56, %57 : vector<8x192xf32>
    %cst_30 = arith.constant 1.000000e+00 : f32
    %59 = vector.broadcast %cst_30 : f32 to vector<8x192xf32>
    %60 = arith.subf %59, %58 : vector<8x192xf32>
    %cst_31 = arith.constant 0.000000e+00 : f32
    %61 = vector.broadcast %cst_31 : f32 to vector<8x192xf32>
    %62 = arith.maximumf %61, %60 : vector<8x192xf32>
    %c0_32 = arith.constant 0 : index
    %c0_33 = arith.constant 0 : index
    %63 = vector.load %arg6[%c0_32, %c0_33] : memref<192x32xf32, #tpu.memory_space<vmem>>, vector<192x32xf32>
    %cst_34 = arith.constant dense<0.000000e+00> : vector<8x32xf32>
    %64 = tpu.matmul %62, %63, %cst_34 {dimension_numbers = #tpu.dot_dimension_numbers<[1], [0], [0], [1], [0, 0, 1, 1], [], []>} : vector<8x192xf32>, vector<192x32xf32>, vector<8x32xf32> -> vector<8x32xf32>
    %65 = arith.addf %64, %28 : vector<8x32xf32>
    %66 = math.tanh %65 : vector<8x32xf32>
    %67 = vector.extract_strided_slice %22 {offsets = [8, 0], sizes = [8, 32], strides = [1, 1]} : vector<64x32xf32> to vector<8x32xf32>
    %68 = arith.addf %67, %66 : vector<8x32xf32>
    %69 = math.tanh %68 : vector<8x32xf32>
    %cst_35 = arith.constant -1.000000e+00 : f32
    %cst_36 = arith.constant 1.000000e+00 : f32
    %70 = vector.broadcast %cst_35 : f32 to vector<8x32xf32>
    %71 = arith.maximumf %70, %69 : vector<8x32xf32>
    %72 = vector.broadcast %cst_36 : f32 to vector<8x32xf32>
    %73 = arith.minimumf %72, %71 : vector<8x32xf32>
    %74 = tpu.concatenate %73, %73, %73, %73, %73, %73 in 1 : vector<8x32xf32>, vector<8x32xf32>, vector<8x32xf32>, vector<8x32xf32>, vector<8x32xf32>, vector<8x32xf32> -> vector<8x192xf32>
    %75 = arith.subf %74, %25 : vector<8x192xf32>
    %76 = math.absf %75 : vector<8x192xf32>
    %cst_37 = arith.constant 2.500000e+00 : f32
    %77 = vector.broadcast %cst_37 : f32 to vector<8x192xf32>
    %78 = arith.mulf %76, %77 : vector<8x192xf32>
    %cst_38 = arith.constant 1.000000e+00 : f32
    %79 = vector.broadcast %cst_38 : f32 to vector<8x192xf32>
    %80 = arith.subf %79, %78 : vector<8x192xf32>
    %cst_39 = arith.constant 0.000000e+00 : f32
    %81 = vector.broadcast %cst_39 : f32 to vector<8x192xf32>
    %82 = arith.maximumf %81, %80 : vector<8x192xf32>
    %c0_40 = arith.constant 0 : index
    %c0_41 = arith.constant 0 : index
    %83 = vector.load %arg6[%c0_40, %c0_41] : memref<192x32xf32, #tpu.memory_space<vmem>>, vector<192x32xf32>
    %cst_42 = arith.constant dense<0.000000e+00> : vector<8x32xf32>
    %84 = tpu.matmul %82, %83, %cst_42 {dimension_numbers = #tpu.dot_dimension_numbers<[1], [0], [0], [1], [0, 0, 1, 1], [], []>} : vector<8x192xf32>, vector<192x32xf32>, vector<8x32xf32> -> vector<8x32xf32>
    %85 = arith.addf %84, %28 : vector<8x32xf32>
    %86 = math.tanh %85 : vector<8x32xf32>
    %87 = vector.extract_strided_slice %22 {offsets = [16, 0], sizes = [8, 32], strides = [1, 1]} : vector<64x32xf32> to vector<8x32xf32>
    %88 = arith.addf %87, %86 : vector<8x32xf32>
    %89 = math.tanh %88 : vector<8x32xf32>
    %cst_43 = arith.constant -1.000000e+00 : f32
    %cst_44 = arith.constant 1.000000e+00 : f32
    %90 = vector.broadcast %cst_43 : f32 to vector<8x32xf32>
    %91 = arith.maximumf %90, %89 : vector<8x32xf32>
    %92 = vector.broadcast %cst_44 : f32 to vector<8x32xf32>
    %93 = arith.minimumf %92, %91 : vector<8x32xf32>
    %94 = tpu.concatenate %93, %93, %93, %93, %93, %93 in 1 : vector<8x32xf32>, vector<8x32xf32>, vector<8x32xf32>, vector<8x32xf32>, vector<8x32xf32>, vector<8x32xf32> -> vector<8x192xf32>
    %95 = arith.subf %94, %25 : vector<8x192xf32>
    %96 = math.absf %95 : vector<8x192xf32>
    %cst_45 = arith.constant 2.500000e+00 : f32
    %97 = vector.broadcast %cst_45 : f32 to vector<8x192xf32>
    %98 = arith.mulf %96, %97 : vector<8x192xf32>
    %cst_46 = arith.constant 1.000000e+00 : f32
    %99 = vector.broadcast %cst_46 : f32 to vector<8x192xf32>
    %100 = arith.subf %99, %98 : vector<8x192xf32>
    %cst_47 = arith.constant 0.000000e+00 : f32
    %101 = vector.broadcast %cst_47 : f32 to vector<8x192xf32>
    %102 = arith.maximumf %101, %100 : vector<8x192xf32>
    %c0_48 = arith.constant 0 : index
    %c0_49 = arith.constant 0 : index
    %103 = vector.load %arg6[%c0_48, %c0_49] : memref<192x32xf32, #tpu.memory_space<vmem>>, vector<192x32xf32>
    %cst_50 = arith.constant dense<0.000000e+00> : vector<8x32xf32>
    %104 = tpu.matmul %102, %103, %cst_50 {dimension_numbers = #tpu.dot_dimension_numbers<[1], [0], [0], [1], [0, 0, 1, 1], [], []>} : vector<8x192xf32>, vector<192x32xf32>, vector<8x32xf32> -> vector<8x32xf32>
    %105 = arith.addf %104, %28 : vector<8x32xf32>
    %106 = math.tanh %105 : vector<8x32xf32>
    %107 = vector.extract_strided_slice %22 {offsets = [24, 0], sizes = [8, 32], strides = [1, 1]} : vector<64x32xf32> to vector<8x32xf32>
    %108 = arith.addf %107, %106 : vector<8x32xf32>
    %109 = math.tanh %108 : vector<8x32xf32>
    %cst_51 = arith.constant -1.000000e+00 : f32
    %cst_52 = arith.constant 1.000000e+00 : f32
    %110 = vector.broadcast %cst_51 : f32 to vector<8x32xf32>
    %111 = arith.maximumf %110, %109 : vector<8x32xf32>
    %112 = vector.broadcast %cst_52 : f32 to vector<8x32xf32>
    %113 = arith.minimumf %112, %111 : vector<8x32xf32>
    %114 = tpu.concatenate %113, %113, %113, %113, %113, %113 in 1 : vector<8x32xf32>, vector<8x32xf32>, vector<8x32xf32>, vector<8x32xf32>, vector<8x32xf32>, vector<8x32xf32> -> vector<8x192xf32>
    %115 = arith.subf %114, %25 : vector<8x192xf32>
    %116 = math.absf %115 : vector<8x192xf32>
    %cst_53 = arith.constant 2.500000e+00 : f32
    %117 = vector.broadcast %cst_53 : f32 to vector<8x192xf32>
    %118 = arith.mulf %116, %117 : vector<8x192xf32>
    %cst_54 = arith.constant 1.000000e+00 : f32
    %119 = vector.broadcast %cst_54 : f32 to vector<8x192xf32>
    %120 = arith.subf %119, %118 : vector<8x192xf32>
    %cst_55 = arith.constant 0.000000e+00 : f32
    %121 = vector.broadcast %cst_55 : f32 to vector<8x192xf32>
    %122 = arith.maximumf %121, %120 : vector<8x192xf32>
    %c0_56 = arith.constant 0 : index
    %c0_57 = arith.constant 0 : index
    %123 = vector.load %arg6[%c0_56, %c0_57] : memref<192x32xf32, #tpu.memory_space<vmem>>, vector<192x32xf32>
    %cst_58 = arith.constant dense<0.000000e+00> : vector<8x32xf32>
    %124 = tpu.matmul %122, %123, %cst_58 {dimension_numbers = #tpu.dot_dimension_numbers<[1], [0], [0], [1], [0, 0, 1, 1], [], []>} : vector<8x192xf32>, vector<192x32xf32>, vector<8x32xf32> -> vector<8x32xf32>
    %125 = arith.addf %124, %28 : vector<8x32xf32>
    %126 = math.tanh %125 : vector<8x32xf32>
    %127 = vector.extract_strided_slice %22 {offsets = [32, 0], sizes = [8, 32], strides = [1, 1]} : vector<64x32xf32> to vector<8x32xf32>
    %128 = arith.addf %127, %126 : vector<8x32xf32>
    %129 = math.tanh %128 : vector<8x32xf32>
    %cst_59 = arith.constant -1.000000e+00 : f32
    %cst_60 = arith.constant 1.000000e+00 : f32
    %130 = vector.broadcast %cst_59 : f32 to vector<8x32xf32>
    %131 = arith.maximumf %130, %129 : vector<8x32xf32>
    %132 = vector.broadcast %cst_60 : f32 to vector<8x32xf32>
    %133 = arith.minimumf %132, %131 : vector<8x32xf32>
    %134 = tpu.concatenate %133, %133, %133, %133, %133, %133 in 1 : vector<8x32xf32>, vector<8x32xf32>, vector<8x32xf32>, vector<8x32xf32>, vector<8x32xf32>, vector<8x32xf32> -> vector<8x192xf32>
    %135 = arith.subf %134, %25 : vector<8x192xf32>
    %136 = math.absf %135 : vector<8x192xf32>
    %cst_61 = arith.constant 2.500000e+00 : f32
    %137 = vector.broadcast %cst_61 : f32 to vector<8x192xf32>
    %138 = arith.mulf %136, %137 : vector<8x192xf32>
    %cst_62 = arith.constant 1.000000e+00 : f32
    %139 = vector.broadcast %cst_62 : f32 to vector<8x192xf32>
    %140 = arith.subf %139, %138 : vector<8x192xf32>
    %cst_63 = arith.constant 0.000000e+00 : f32
    %141 = vector.broadcast %cst_63 : f32 to vector<8x192xf32>
    %142 = arith.maximumf %141, %140 : vector<8x192xf32>
    %c0_64 = arith.constant 0 : index
    %c0_65 = arith.constant 0 : index
    %143 = vector.load %arg6[%c0_64, %c0_65] : memref<192x32xf32, #tpu.memory_space<vmem>>, vector<192x32xf32>
    %cst_66 = arith.constant dense<0.000000e+00> : vector<8x32xf32>
    %144 = tpu.matmul %142, %143, %cst_66 {dimension_numbers = #tpu.dot_dimension_numbers<[1], [0], [0], [1], [0, 0, 1, 1], [], []>} : vector<8x192xf32>, vector<192x32xf32>, vector<8x32xf32> -> vector<8x32xf32>
    %145 = arith.addf %144, %28 : vector<8x32xf32>
    %146 = math.tanh %145 : vector<8x32xf32>
    %147 = vector.extract_strided_slice %22 {offsets = [40, 0], sizes = [8, 32], strides = [1, 1]} : vector<64x32xf32> to vector<8x32xf32>
    %148 = arith.addf %147, %146 : vector<8x32xf32>
    %149 = math.tanh %148 : vector<8x32xf32>
    %cst_67 = arith.constant -1.000000e+00 : f32
    %cst_68 = arith.constant 1.000000e+00 : f32
    %150 = vector.broadcast %cst_67 : f32 to vector<8x32xf32>
    %151 = arith.maximumf %150, %149 : vector<8x32xf32>
    %152 = vector.broadcast %cst_68 : f32 to vector<8x32xf32>
    %153 = arith.minimumf %152, %151 : vector<8x32xf32>
    %154 = tpu.concatenate %153, %153, %153, %153, %153, %153 in 1 : vector<8x32xf32>, vector<8x32xf32>, vector<8x32xf32>, vector<8x32xf32>, vector<8x32xf32>, vector<8x32xf32> -> vector<8x192xf32>
    %155 = arith.subf %154, %25 : vector<8x192xf32>
    %156 = math.absf %155 : vector<8x192xf32>
    %cst_69 = arith.constant 2.500000e+00 : f32
    %157 = vector.broadcast %cst_69 : f32 to vector<8x192xf32>
    %158 = arith.mulf %156, %157 : vector<8x192xf32>
    %cst_70 = arith.constant 1.000000e+00 : f32
    %159 = vector.broadcast %cst_70 : f32 to vector<8x192xf32>
    %160 = arith.subf %159, %158 : vector<8x192xf32>
    %cst_71 = arith.constant 0.000000e+00 : f32
    %161 = vector.broadcast %cst_71 : f32 to vector<8x192xf32>
    %162 = arith.maximumf %161, %160 : vector<8x192xf32>
    %c0_72 = arith.constant 0 : index
    %c0_73 = arith.constant 0 : index
    %163 = vector.load %arg6[%c0_72, %c0_73] : memref<192x32xf32, #tpu.memory_space<vmem>>, vector<192x32xf32>
    %cst_74 = arith.constant dense<0.000000e+00> : vector<8x32xf32>
    %164 = tpu.matmul %162, %163, %cst_74 {dimension_numbers = #tpu.dot_dimension_numbers<[1], [0], [0], [1], [0, 0, 1, 1], [], []>} : vector<8x192xf32>, vector<192x32xf32>, vector<8x32xf32> -> vector<8x32xf32>
    %165 = arith.addf %164, %28 : vector<8x32xf32>
    %166 = math.tanh %165 : vector<8x32xf32>
    %167 = vector.extract_strided_slice %22 {offsets = [48, 0], sizes = [8, 32], strides = [1, 1]} : vector<64x32xf32> to vector<8x32xf32>
    %168 = arith.addf %167, %166 : vector<8x32xf32>
    %169 = math.tanh %168 : vector<8x32xf32>
    %cst_75 = arith.constant -1.000000e+00 : f32
    %cst_76 = arith.constant 1.000000e+00 : f32
    %170 = vector.broadcast %cst_75 : f32 to vector<8x32xf32>
    %171 = arith.maximumf %170, %169 : vector<8x32xf32>
    %172 = vector.broadcast %cst_76 : f32 to vector<8x32xf32>
    %173 = arith.minimumf %172, %171 : vector<8x32xf32>
    %174 = tpu.concatenate %173, %173, %173, %173, %173, %173 in 1 : vector<8x32xf32>, vector<8x32xf32>, vector<8x32xf32>, vector<8x32xf32>, vector<8x32xf32>, vector<8x32xf32> -> vector<8x192xf32>
    %175 = arith.subf %174, %25 : vector<8x192xf32>
    %176 = math.absf %175 : vector<8x192xf32>
    %cst_77 = arith.constant 2.500000e+00 : f32
    %177 = vector.broadcast %cst_77 : f32 to vector<8x192xf32>
    %178 = arith.mulf %176, %177 : vector<8x192xf32>
    %cst_78 = arith.constant 1.000000e+00 : f32
    %179 = vector.broadcast %cst_78 : f32 to vector<8x192xf32>
    %180 = arith.subf %179, %178 : vector<8x192xf32>
    %cst_79 = arith.constant 0.000000e+00 : f32
    %181 = vector.broadcast %cst_79 : f32 to vector<8x192xf32>
    %182 = arith.maximumf %181, %180 : vector<8x192xf32>
    %c0_80 = arith.constant 0 : index
    %c0_81 = arith.constant 0 : index
    %183 = vector.load %arg6[%c0_80, %c0_81] : memref<192x32xf32, #tpu.memory_space<vmem>>, vector<192x32xf32>
    %cst_82 = arith.constant dense<0.000000e+00> : vector<8x32xf32>
    %184 = tpu.matmul %182, %183, %cst_82 {dimension_numbers = #tpu.dot_dimension_numbers<[1], [0], [0], [1], [0, 0, 1, 1], [], []>} : vector<8x192xf32>, vector<192x32xf32>, vector<8x32xf32> -> vector<8x32xf32>
    %185 = arith.addf %184, %28 : vector<8x32xf32>
    %186 = math.tanh %185 : vector<8x32xf32>
    %187 = vector.extract_strided_slice %22 {offsets = [56, 0], sizes = [8, 32], strides = [1, 1]} : vector<64x32xf32> to vector<8x32xf32>
    %188 = arith.addf %187, %186 : vector<8x32xf32>
    %189 = math.tanh %188 : vector<8x32xf32>
    %190 = tpu.concatenate %49, %69, %89, %109, %129, %149, %169, %189 in 1 : vector<8x32xf32>, vector<8x32xf32>, vector<8x32xf32>, vector<8x32xf32>, vector<8x32xf32>, vector<8x32xf32>, vector<8x32xf32>, vector<8x32xf32> -> vector<8x256xf32>
    %c0_83 = arith.constant 0 : index
    %c0_84 = arith.constant 0 : index
    %191 = vector.load %arg9[%c0_83, %c0_84] : memref<8x256xf32, #tpu.memory_space<vmem>>, vector<8x256xf32>
    tpu.vector_store %arg9[%c0_83, %c0_84], %190 {strides = array<i32>} : memref<8x256xf32, #tpu.memory_space<vmem>>, vector<8x256xf32>,
    return
  }
  func.func @transform_0(%arg0: i32) -> (i32, i32) {
    %c0_i32 = arith.constant 0 : i32
    %c0_i32_0 = arith.constant 0 : i32
    %c0_i32_1 = arith.constant 0 : i32
    return %c0_i32, %c0_i32_0 : i32, i32
  }
  func.func @transform_1(%arg0: i32) -> (i32, i32) {
    %c0_i32 = arith.constant 0 : i32
    %c0_i32_0 = arith.constant 0 : i32
    %c0_i32_1 = arith.constant 0 : i32
    return %c0_i32, %c0_i32_0 : i32, i32
  }
  func.func @transform_2(%arg0: i32) -> (i32, i32) {
    %c0_i32 = arith.constant 0 : i32
    %c0_i32_0 = arith.constant 0 : i32
    %c0_i32_1 = arith.constant 0 : i32
    return %c0_i32, %c0_i32_0 : i32, i32
  }
  func.func @transform_3(%arg0: i32) -> (i32, i32) {
    %c0_i32 = arith.constant 0 : i32
    %c0_i32_0 = arith.constant 0 : i32
    %c0_i32_1 = arith.constant 0 : i32
    return %c0_i32, %c0_i32_0 : i32, i32
  }
  func.func @transform_4(%arg0: i32) -> (i32, i32) {
    %c0_i32 = arith.constant 0 : i32
    %c0_i32_0 = arith.constant 0 : i32
    %c0_i32_1 = arith.constant 0 : i32
    return %c0_i32, %c0_i32_0 : i32, i32
  }
  func.func @transform_5(%arg0: i32) -> (i32, i32) {
    %c0_i32 = arith.constant 0 : i32
    %c0_i32_0 = arith.constant 0 : i32
    %c0_i32_1 = arith.constant 0 : i32
    return %c0_i32, %c0_i32_0 : i32, i32
  }
  func.func @transform_6(%arg0: i32) -> (i32, i32) {
    %c0_i32 = arith.constant 0 : i32
    %c0_i32_0 = arith.constant 0 : i32
    %c0_i32_1 = arith.constant 0 : i32
    return %c0_i32, %c0_i32_0 : i32, i32
  }
  func.func @transform_7(%arg0: i32) -> (i32, i32) {
    %c0_i32 = arith.constant 0 : i32
    %c0_i32_0 = arith.constant 0 : i32
    %c0_i32_1 = arith.constant 0 : i32
    return %c0_i32, %c0_i32_0 : i32, i32
  }
  func.func @transform_8(%arg0: i32) -> (i32, i32) {
    %c0_i32 = arith.constant 0 : i32
    %c0_i32_0 = arith.constant 0 : i32
    %c0_i32_1 = arith.constant 0 : i32
    return %c0_i32, %c0_i32_0 : i32, i32
  }
}

</mosaic_0001>

<llo_original>
// kernel: tpu_custom_call.1
$region0: #{tpu_custom_call.1}
  #allocation0 [shape = 'u32[]', space=smem, size = 0x4, offset = 0x4, fixed_abs, tag = 'smem constant byte address 0x4 - core index']
  #allocation1 [shape = 'u32[144,128]{1,0:T(1,128)}', space=vmem, size = 0x12000, scoped, tag = 'internal scratch']
  %s0 = inlined_call_operand.vmem [shape: f32[64,16], index: 0, kind: input, shape index: {}]
  %s1 = inlined_call_operand.vmem [shape: f32[8,32], index: 1, kind: input, shape index: {}]
  %s2 = inlined_call_operand.vmem [shape: f32[128,32], index: 2, kind: input, shape index: {}]
  %s3 = inlined_call_operand.vmem [shape: f32[1,128], index: 3, kind: input, shape index: {}]
  %s4 = inlined_call_operand.vmem [shape: f32[1,32], index: 4, kind: input, shape index: {}]
  %s5 = inlined_call_operand.vmem [shape: f32[192,32], index: 5, kind: input, shape index: {}]
  %s6 = inlined_call_operand.vmem [shape: f32[1,192], index: 6, kind: input, shape index: {}]
  %s7 = inlined_call_operand.vmem [shape: f32[1,32], index: 7, kind: input, shape index: {}]
  %s8 = inlined_call_operand.hbm [shape: f32[8,256], index: 8, kind: output, shape index: {}]
  %s9 = sld [smem:[#allocation0]]
  $region42: #{tpu_custom_call.1} parent=0
    _
  %s11 = ssub.s32 1, %s9
  %s12 = scalar_select 0, %s11, %s9
  $region1: #{tpu_custom_call.1} parent=0
    #allocation2 [shape = 'u8[8192]{0}', space=vmem, size = 0x2000, scoped, tag = 'output window, operand 0, single buffered']
    #allocation3 [shape = 's32[1]{0}', space=sflag, size = 0x4, scoped, tag = 'scoped memory for tpu_custom_call.1']
    %13 = vsyncpa [#allocation3], 0
    // Predicated region
    $region2: #{tpu_custom_call.1} parent=1 // pred_check
      _
    $region3: #{tpu_custom_call.1} parent=1 // pred_check_branch
      %15 = sbr.rel (0) target = $region5
    $region4: #{tpu_custom_call.1} parent=1 // pred_region
      _
    $region5: #{tpu_custom_call.1} parent=1 // pred_fallthru
      _
    // Predicated region
    $region6: #{tpu_custom_call.1} parent=1 // pred_check
      _
    $region7: #{tpu_custom_call.1} parent=1 // pred_check_branch
      %17 = sbr.rel (0) target = $region9
    $region8: #{tpu_custom_call.1} parent=1 // pred_region
      _
    $region9: #{tpu_custom_call.1} parent=1 // pred_fallthru
      _
    // Predicated region
    $region10: #{tpu_custom_call.1} parent=1 // pred_check
      _
    $region11: #{tpu_custom_call.1} parent=1 // pred_check_branch
      %19 = sbr.rel (0) target = $region13
    $region12: #{tpu_custom_call.1} parent=1 // pred_region
      _
    $region13: #{tpu_custom_call.1} parent=1 // pred_fallthru
      _
    // Predicated region
    $region14: #{tpu_custom_call.1} parent=1 // pred_check
      _
    $region15: #{tpu_custom_call.1} parent=1 // pred_check_branch
      %21 = sbr.rel (0) target = $region17
    $region16: #{tpu_custom_call.1} parent=1 // pred_region
      _
    $region17: #{tpu_custom_call.1} parent=1 // pred_fallthru
      _
    // Predicated region
    $region18: #{tpu_custom_call.1} parent=1 // pred_check
      _
    $region19: #{tpu_custom_call.1} parent=1 // pred_check_branch
      %23 = sbr.rel (0) target = $region21
    $region20: #{tpu_custom_call.1} parent=1 // pred_region
      _
    $region21: #{tpu_custom_call.1} parent=1 // pred_fallthru
      _
    // Predicated region
    $region22: #{tpu_custom_call.1} parent=1 // pred_check
      _
    $region23: #{tpu_custom_call.1} parent=1 // pred_check_branch
      %25 = sbr.rel (0) target = $region25
    $region24: #{tpu_custom_call.1} parent=1 // pred_region
      _
    $region25: #{tpu_custom_call.1} parent=1 // pred_fallthru
      _
    // Predicated region
    $region26: #{tpu_custom_call.1} parent=1 // pred_check
      _
    $region27: #{tpu_custom_call.1} parent=1 // pred_check_branch
      %27 = sbr.rel (0) target = $region29
    $region28: #{tpu_custom_call.1} parent=1 // pred_region
      _
    $region29: #{tpu_custom_call.1} parent=1 // pred_fallthru
      _
    // Predicated region
    $region30: #{tpu_custom_call.1} parent=1 // pred_check
      _
    $region31: #{tpu_custom_call.1} parent=1 // pred_check_branch
      %29 = sbr.rel (0) target = $region33
    $region32: #{tpu_custom_call.1} parent=1 // pred_region
      _
    $region33: #{tpu_custom_call.1} parent=1 // pred_fallthru
      _
    %v30 = vld [vmem:[%s0] sm:$0xff]
    %v31 = vld [vmem:[%s0 + $0x8] sm:$0xff]
    %v32 = vld [vmem:[%s0 + $0x10] sm:$0xff]
    %v33 = vld [vmem:[%s0 + $0x18] sm:$0xff]
    %v34 = vld [vmem:[%s0 + $0x20] sm:$0xff]
    %v35 = vld [vmem:[%s0 + $0x28] sm:$0xff]
    %v36 = vld [vmem:[%s0 + $0x30] sm:$0xff]
    %v37 = vld [vmem:[%s0 + $0x38] sm:$0xff]
    %v38 = vmax.f32 %v30, -2.0
    %v39 = vmax.f32 %v31, -2.0
    %v40 = vmax.f32 %v32, -2.0
    %v41 = vmax.f32 %v33, -2.0
    %v42 = vmax.f32 %v34, -2.0
    %v43 = vmax.f32 %v35, -2.0
    %v44 = vmax.f32 %v36, -2.0
    %v45 = vmax.f32 %v37, -2.0
    %v46 = vmin.f32 %v38, 2.0
    %v47 = vmin.f32 %v39, 2.0
    %v48 = vmin.f32 %v40, 2.0
    %v49 = vmin.f32 %v41, 2.0
    %v50 = vmin.f32 %v42, 2.0
    %v51 = vmin.f32 %v43, 2.0
    %v52 = vmin.f32 %v44, 2.0
    %v53 = vmin.f32 %v45, 2.0
    %62 = vrot.lane.b32.xlu0 %v46, 16
    %v63 = vpop.permute.xlu0 %62
    %64 = vrot.lane.b32.xlu0 %v47, 16
    %v65 = vpop.permute.xlu0 %64
    %66 = vrot.lane.b32.xlu0 %v48, 16
    %v67 = vpop.permute.xlu0 %66
    %68 = vrot.lane.b32.xlu0 %v49, 16
    %v69 = vpop.permute.xlu0 %68
    %70 = vrot.lane.b32.xlu0 %v50, 16
    %v71 = vpop.permute.xlu0 %70
    %72 = vrot.lane.b32.xlu0 %v51, 16
    %v73 = vpop.permute.xlu0 %72
    %74 = vrot.lane.b32.xlu0 %v52, 16
    %v75 = vpop.permute.xlu0 %74
    %76 = vrot.lane.b32.xlu0 %v53, 16
    %v77 = vpop.permute.xlu0 %76
    %86 = vrot.lane.b32.xlu0 %v46, 32
    %v87 = vpop.permute.xlu0 %86
    %88 = vrot.lane.b32.xlu0 %v47, 32
    %v89 = vpop.permute.xlu0 %88
    %90 = vrot.lane.b32.xlu0 %v48, 32
    %v91 = vpop.permute.xlu0 %90
    %92 = vrot.lane.b32.xlu0 %v49, 32
    %v93 = vpop.permute.xlu0 %92
    %94 = vrot.lane.b32.xlu0 %v50, 32
    %v95 = vpop.permute.xlu0 %94
    %96 = vrot.lane.b32.xlu0 %v51, 32
    %v97 = vpop.permute.xlu0 %96
    %98 = vrot.lane.b32.xlu0 %v52, 32
    %v99 = vpop.permute.xlu0 %98
    %100 = vrot.lane.b32.xlu0 %v53, 32
    %v101 = vpop.permute.xlu0 %100
    %110 = vrot.lane.b32.xlu0 %v46, 48
    %v111 = vpop.permute.xlu0 %110
    %112 = vrot.lane.b32.xlu0 %v47, 48
    %v113 = vpop.permute.xlu0 %112
    %114 = vrot.lane.b32.xlu0 %v48, 48
    %v115 = vpop.permute.xlu0 %114
    %116 = vrot.lane.b32.xlu0 %v49, 48
    %v117 = vpop.permute.xlu0 %116
    %118 = vrot.lane.b32.xlu0 %v50, 48
    %v119 = vpop.permute.xlu0 %118
    %120 = vrot.lane.b32.xlu0 %v51, 48
    %v121 = vpop.permute.xlu0 %120
    %122 = vrot.lane.b32.xlu0 %v52, 48
    %v123 = vpop.permute.xlu0 %122
    %124 = vrot.lane.b32.xlu0 %v53, 48
    %v125 = vpop.permute.xlu0 %124
    %134 = vrot.lane.b32.xlu0 %v46, 64
    %v135 = vpop.permute.xlu0 %134
    %136 = vrot.lane.b32.xlu0 %v47, 64
    %v137 = vpop.permute.xlu0 %136
    %138 = vrot.lane.b32.xlu0 %v48, 64
    %v139 = vpop.permute.xlu0 %138
    %140 = vrot.lane.b32.xlu0 %v49, 64
    %v141 = vpop.permute.xlu0 %140
    %142 = vrot.lane.b32.xlu0 %v50, 64
    %v143 = vpop.permute.xlu0 %142
    %144 = vrot.lane.b32.xlu0 %v51, 64
    %v145 = vpop.permute.xlu0 %144
    %146 = vrot.lane.b32.xlu0 %v52, 64
    %v147 = vpop.permute.xlu0 %146
    %148 = vrot.lane.b32.xlu0 %v53, 64
    %v149 = vpop.permute.xlu0 %148
    %158 = vrot.lane.b32.xlu0 %v46, 80
    %v159 = vpop.permute.xlu0 %158
    %160 = vrot.lane.b32.xlu0 %v47, 80
    %v161 = vpop.permute.xlu0 %160
    %162 = vrot.lane.b32.xlu0 %v48, 80
    %v163 = vpop.permute.xlu0 %162
    %164 = vrot.lane.b32.xlu0 %v49, 80
    %v165 = vpop.permute.xlu0 %164
    %166 = vrot.lane.b32.xlu0 %v50, 80
    %v167 = vpop.permute.xlu0 %166
    %168 = vrot.lane.b32.xlu0 %v51, 80
    %v169 = vpop.permute.xlu0 %168
    %170 = vrot.lane.b32.xlu0 %v52, 80
    %v171 = vpop.permute.xlu0 %170
    %172 = vrot.lane.b32.xlu0 %v53, 80
    %v173 = vpop.permute.xlu0 %172
    %182 = vrot.lane.b32.xlu0 %v46, 96
    %v183 = vpop.permute.xlu0 %182
    %184 = vrot.lane.b32.xlu0 %v47, 96
    %v185 = vpop.permute.xlu0 %184
    %186 = vrot.lane.b32.xlu0 %v48, 96
    %v187 = vpop.permute.xlu0 %186
    %188 = vrot.lane.b32.xlu0 %v49, 96
    %v189 = vpop.permute.xlu0 %188
    %190 = vrot.lane.b32.xlu0 %v50, 96
    %v191 = vpop.permute.xlu0 %190
    %192 = vrot.lane.b32.xlu0 %v51, 96
    %v193 = vpop.permute.xlu0 %192
    %194 = vrot.lane.b32.xlu0 %v52, 96
    %v195 = vpop.permute.xlu0 %194
    %196 = vrot.lane.b32.xlu0 %v53, 96
    %v197 = vpop.permute.xlu0 %196
    %206 = vrot.lane.b32.xlu0 %v46, 112
    %v207 = vpop.permute.xlu0 %206
    %208 = vrot.lane.b32.xlu0 %v47, 112
    %v209 = vpop.permute.xlu0 %208
    %210 = vrot.lane.b32.xlu0 %v48, 112
    %v211 = vpop.permute.xlu0 %210
    %212 = vrot.lane.b32.xlu0 %v49, 112
    %v213 = vpop.permute.xlu0 %212
    %214 = vrot.lane.b32.xlu0 %v50, 112
    %v215 = vpop.permute.xlu0 %214
    %216 = vrot.lane.b32.xlu0 %v51, 112
    %v217 = vpop.permute.xlu0 %216
    %218 = vrot.lane.b32.xlu0 %v52, 112
    %v219 = vpop.permute.xlu0 %218
    %220 = vrot.lane.b32.xlu0 %v53, 112
    %v221 = vpop.permute.xlu0 %220
    %vm230 = vcmask 130048
    %v231 = vsel %vm230, %v46, %v63
    %v232 = vsel %vm230, %v47, %v65
    %v233 = vsel %vm230, %v48, %v67
    %v234 = vsel %vm230, %v49, %v69
    %v235 = vsel %vm230, %v50, %v71
    %v236 = vsel %vm230, %v51, %v73
    %v237 = vsel %vm230, %v52, %v75
    %v238 = vsel %vm230, %v53, %v77
    %vm239 = vcmask 261120
    %v240 = vsel %vm239, %v231, %v87
    %v241 = vsel %vm239, %v232, %v89
    %v242 = vsel %vm239, %v233, %v91
    %v243 = vsel %vm239, %v234, %v93
    %v244 = vsel %vm239, %v235, %v95
    %v245 = vsel %vm239, %v236, %v97
    %v246 = vsel %vm239, %v237, %v99
    %v247 = vsel %vm239, %v238, %v101
    %vm248 = vcmask 392192
    %v249 = vsel %vm248, %v240, %v111
    %v250 = vsel %vm248, %v241, %v113
    %v251 = vsel %vm248, %v242, %v115
    %v252 = vsel %vm248, %v243, %v117
    %v253 = vsel %vm248, %v244, %v119
    %v254 = vsel %vm248, %v245, %v121
    %v255 = vsel %vm248, %v246, %v123
    %v256 = vsel %vm248, %v247, %v125
    %vm257 = vcmask 523264
    %v258 = vsel %vm257, %v249, %v135
    %v259 = vsel %vm257, %v250, %v137
    %v260 = vsel %vm257, %v251, %v139
    %v261 = vsel %vm257, %v252, %v141
    %v262 = vsel %vm257, %v253, %v143
    %v263 = vsel %vm257, %v254, %v145
    %v264 = vsel %vm257, %v255, %v147
    %v265 = vsel %vm257, %v256, %v149
    %vm266 = vcmask 654336
    %v267 = vsel %vm266, %v258, %v159
    %v268 = vsel %vm266, %v259, %v161
    %v269 = vsel %vm266, %v260, %v163
    %v270 = vsel %vm266, %v261, %v165
    %v271 = vsel %vm266, %v262, %v167
    %v272 = vsel %vm266, %v263, %v169
    %v273 = vsel %vm266, %v264, %v171
    %v274 = vsel %vm266, %v265, %v173
    %vm275 = vcmask 785408
    %v276 = vsel %vm275, %v267, %v183
    %v277 = vsel %vm275, %v268, %v185
    %v278 = vsel %vm275, %v269, %v187
    %v279 = vsel %vm275, %v270, %v189
    %v280 = vsel %vm275, %v271, %v191
    %v281 = vsel %vm275, %v272, %v193
    %v282 = vsel %vm275, %v273, %v195
    %v283 = vsel %vm275, %v274, %v197
    %vm284 = vcmask 916480
    %v285 = vsel %vm284, %v276, %v207
    %v286 = vsel %vm284, %v277, %v209
    %v287 = vsel %vm284, %v278, %v211
    %v288 = vsel %vm284, %v279, %v213
    %v289 = vsel %vm284, %v280, %v215
    %v290 = vsel %vm284, %v281, %v217
    %v291 = vsel %vm284, %v282, %v219
    %v292 = vsel %vm284, %v283, %v221
    %v293 = vld [vmem:[%s3] sm:$0x1]
    %v295 = vlaneseq
    %v296 = vshrl.u32 %v295, 7
    %v297 = vsub.s32 0, %v296
    %v298 = vrot.slane %v293, %v297
    %v300 = vsub.f32 %v285, %v298
    %v301 = vsub.f32 %v286, %v298
    %v302 = vsub.f32 %v287, %v298
    %v303 = vsub.f32 %v288, %v298
    %v304 = vsub.f32 %v289, %v298
    %v305 = vsub.f32 %v290, %v298
    %v306 = vsub.f32 %v291, %v298
    %v307 = vsub.f32 %v292, %v298
    %v308 = vand.u32 2147483647, %v300
    %v309 = vand.u32 2147483647, %v301
    %v310 = vand.u32 2147483647, %v302
    %v311 = vand.u32 2147483647, %v303
    %v312 = vand.u32 2147483647, %v304
    %v313 = vand.u32 2147483647, %v305
    %v314 = vand.u32 2147483647, %v306
    %v315 = vand.u32 2147483647, %v307
    %v316 = vmul.f32 %v308, 1.75
    %v317 = vmul.f32 %v309, 1.75
    %v318 = vmul.f32 %v310, 1.75
    %v319 = vmul.f32 %v311, 1.75
    %v320 = vmul.f32 %v312, 1.75
    %v321 = vmul.f32 %v313, 1.75
    %v322 = vmul.f32 %v314, 1.75
    %v323 = vmul.f32 %v315, 1.75
    %v324 = vsub.f32 1.0, %v316
    %v325 = vsub.f32 1.0, %v317
    %v326 = vsub.f32 1.0, %v318
    %v327 = vsub.f32 1.0, %v319
    %v328 = vsub.f32 1.0, %v320
    %v329 = vsub.f32 1.0, %v321
    %v330 = vsub.f32 1.0, %v322
    %v331 = vsub.f32 1.0, %v323
    %v332 = vmax.f32 %v324, 0.0
    %v333 = vmax.f32 %v325, 0.0
    %v334 = vmax.f32 %v326, 0.0
    %v335 = vmax.f32 %v327, 0.0
    %v336 = vmax.f32 %v328, 0.0
    %v337 = vmax.f32 %v329, 0.0
    %v338 = vmax.f32 %v330, 0.0
    %v339 = vmax.f32 %v331, 0.0
    %v340 = vld [vmem:[%s2] sm:$0xff]
    %v341 = vld [vmem:[%s2 + $0x8] sm:$0xff]
    %v342 = vld [vmem:[%s2 + $0x10] sm:$0xff]
    %v343 = vld [vmem:[%s2 + $0x18] sm:$0xff]
    %v344 = vld [vmem:[%s2 + $0x20] sm:$0xff]
    %v345 = vld [vmem:[%s2 + $0x28] sm:$0xff]
    %v346 = vld [vmem:[%s2 + $0x30] sm:$0xff]
    %v347 = vld [vmem:[%s2 + $0x38] sm:$0xff]
    %v348 = vld [vmem:[%s2 + $0x40] sm:$0xff]
    %v349 = vld [vmem:[%s2 + $0x48] sm:$0xff]
    %v350 = vld [vmem:[%s2 + $0x50] sm:$0xff]
    %v351 = vld [vmem:[%s2 + $0x58] sm:$0xff]
    %v352 = vld [vmem:[%s2 + $0x60] sm:$0xff]
    %v353 = vld [vmem:[%s2 + $0x68] sm:$0xff]
    %v354 = vld [vmem:[%s2 + $0x70] sm:$0xff]
    %v355 = vld [vmem:[%s2 + $0x78] sm:$0xff]
    %v356 = vld [vmem:[%s4] sm:$0x1]
    %v358 = vlaneseq
    %v359 = vshrl.u32 %v358, 7
    %v360 = vsub.s32 0, %v359
    %v361 = vrot.slane %v356, %v360
    %363 = vmatprep.subr.mxu0 0.0
    %364 = vmatpush1.msra.mxu0 %v340
    %365 = vmatprep.subr.mxu0 0.0
    %366 = vmatpush1.msra.mxu0 %v341
    %367 = vmatprep.subr.mxu0 0.0
    %368 = vmatpush1.msra.mxu0 %v342
    %369 = vmatprep.subr.mxu0 0.0
    %370 = vmatpush1.msra.mxu0 %v343
    %371 = vmatprep.subr.mxu0 0.0
    %372 = vmatpush1.msra.mxu0 %v344
    %373 = vmatprep.subr.mxu0 0.0
    %374 = vmatpush1.msra.mxu0 %v345
    %375 = vmatprep.subr.mxu0 0.0
    %376 = vmatpush1.msra.mxu0 %v346
    %377 = vmatprep.subr.mxu0 0.0
    %378 = vmatpush1.msra.mxu0 %v347
    %379 = vmatprep.subr.mxu0 0.0
    %380 = vmatpush1.msra.mxu0 %v348
    %381 = vmatprep.subr.mxu0 0.0
    %382 = vmatpush1.msra.mxu0 %v349
    %383 = vmatprep.subr.mxu0 0.0
    %384 = vmatpush1.msra.mxu0 %v350
    %385 = vmatprep.subr.mxu0 0.0
    %386 = vmatpush1.msra.mxu0 %v351
    %387 = vmatprep.subr.mxu0 0.0
    %388 = vmatpush1.msra.mxu0 %v352
    %389 = vmatprep.subr.mxu0 0.0
    %390 = vmatpush1.msra.mxu0 %v353
    %391 = vmatprep.subr.mxu0 0.0
    %392 = vmatpush1.msra.mxu0 %v354
    %393 = vmatprep.subr.mxu0 0.0
    %394 = vmatpush1.msra.mxu0 %v355
    %395 = vmatprep.subr.mxu0 0.0
    %396 = vmatpush1.msra.mxu0 0.0
    %397 = vmatprep.subr.mxu0 0.0
    %398 = vmatpush1.msra.mxu0 0.0
    %399 = vmatprep.subr.mxu0 0.0
    %400 = vmatpush1.msra.mxu0 0.0
    %401 = vmatprep.subr.mxu0 0.0
    %402 = vmatpush1.msra.mxu0 0.0
    %403 = vmatprep.subr.mxu0 0.0
    %404 = vmatpush1.msra.mxu0 0.0
    %405 = vmatprep.subr.mxu0 0.0
    %406 = vmatpush1.msra.mxu0 0.0
    %407 = vmatprep.subr.mxu0 0.0
    %408 = vmatpush1.msra.mxu0 0.0
    %409 = vmatprep.subr.mxu0 0.0
    %410 = vmatpush1.msra.mxu0 0.0
    %411 = vmatprep.subr.mxu0 0.0
    %412 = vmatpush1.msra.mxu0 0.0
    %413 = vmatprep.subr.mxu0 0.0
    %414 = vmatpush1.msra.mxu0 0.0
    %415 = vmatprep.subr.mxu0 0.0
    %416 = vmatpush1.msra.mxu0 0.0
    %417 = vmatprep.subr.mxu0 0.0
    %418 = vmatpush1.msra.mxu0 0.0
    %419 = vmatprep.subr.mxu0 0.0
    %420 = vmatpush1.msra.mxu0 0.0
    %421 = vmatprep.subr.mxu0 0.0
    %422 = vmatpush1.msra.mxu0 0.0
    %423 = vmatprep.subr.mxu0 0.0
    %424 = vmatpush1.msra.mxu0 0.0
    %425 = vmatprep.subr.mxu0 0.0
    %426 = vmatpush1.msra.mxu0 0.0
    %427 = vmatprep.mubr.f32.mxu0 0.0
    %428 = vmatmul.mubr.f32.gmra.mrb[0].mxu0 %v332
    %v429 = vpop.f32.mrb[0].mxu0
    %v430 = vadd.f32 %v361, %v429
    %v431 = vpop.f32.mrb[0].mxu0
    %432 = vmatprep.mubr.f32.mxu0 0.0
    %433 = vmatmul.mubr.f32.gmra.mrb[0].mxu0 %v333
    %v434 = vpop.f32.mrb[0].mxu0
    %v435 = vadd.f32 %v361, %v434
    %v436 = vpop.f32.mrb[0].mxu0
    %437 = vmatprep.mubr.f32.mxu0 0.0
    %438 = vmatmul.mubr.f32.gmra.mrb[0].mxu0 %v334
    %v439 = vpop.f32.mrb[0].mxu0
    %v440 = vadd.f32 %v361, %v439
    %v441 = vpop.f32.mrb[0].mxu0
    %442 = vmatprep.mubr.f32.mxu0 0.0
    %443 = vmatmul.mubr.f32.gmra.mrb[0].mxu0 %v335
    %v444 = vpop.f32.mrb[0].mxu0
    %v445 = vadd.f32 %v361, %v444
    %v446 = vpop.f32.mrb[0].mxu0
    %447 = vmatprep.mubr.f32.mxu0 0.0
    %448 = vmatmul.mubr.f32.gmra.mrb[0].mxu0 %v336
    %v449 = vpop.f32.mrb[0].mxu0
    %v450 = vadd.f32 %v361, %v449
    %v451 = vpop.f32.mrb[0].mxu0
    %452 = vmatprep.mubr.f32.mxu0 0.0
    %453 = vmatmul.mubr.f32.gmra.mrb[0].mxu0 %v337
    %v454 = vpop.f32.mrb[0].mxu0
    %v455 = vadd.f32 %v361, %v454
    %v456 = vpop.f32.mrb[0].mxu0
    %457 = vmatprep.mubr.f32.mxu0 0.0
    %458 = vmatmul.mubr.f32.gmra.mrb[0].mxu0 %v338
    %v459 = vpop.f32.mrb[0].mxu0
    %v460 = vadd.f32 %v361, %v459
    %v461 = vpop.f32.mrb[0].mxu0
    %462 = vmatprep.mubr.f32.mxu0 0.0
    %463 = vmatmul.mubr.f32.gmra.mrb[0].mxu0 %v339
    %v464 = vpop.f32.mrb[0].mxu0
    %v465 = vadd.f32 %v361, %v464
    %v466 = vpop.f32.mrb[0].mxu0
    %467 = vdwg.mxu0
    %v468 = vmax.f32 %v430, 0.0
    %v469 = vmax.f32 %v435, 0.0
    %v470 = vmax.f32 %v440, 0.0
    %v471 = vmax.f32 %v445, 0.0
    %v472 = vmax.f32 %v450, 0.0
    %v473 = vmax.f32 %v455, 0.0
    %v474 = vmax.f32 %v460, 0.0
    %v475 = vmax.f32 %v465, 0.0
    %v476 = vld [vmem:[%s6] sm:$0x3]
    %v478 = vlaneseq
    %v479 = vshrl.u32 %v478, 7
    %v480 = vsub.s32 0, %v479
    %v481 = vrot.slane %v476, %v480
    %v482 = vlaneseq
    %v483 = vshrl.u32 %v482, 7
    %v484 = vsub.s32 1, %v483
    %v485 = vrot.slane %v476, %v484
    %v488 = vld [vmem:[%s7] sm:$0x1]
    %v490 = vlaneseq
    %v491 = vshrl.u32 %v490, 7
    %v492 = vsub.s32 0, %v491
    %v493 = vrot.slane %v488, %v492
    %v495 = vld [vmem:[%s1] sm:$0xff]
    %v496 = vmax.f32 %v495, -1.0
    %v497 = vmin.f32 %v496, 1.0
    %499 = vrot.lane.b32.xlu0 %v497, 32
    %v500 = vpop.permute.xlu0 %499
    %502 = vrot.lane.b32.xlu0 %v497, 64
    %v503 = vpop.permute.xlu0 %502
    %505 = vrot.lane.b32.xlu0 %v497, 96
    %v506 = vpop.permute.xlu0 %505
    %v508 = vsel %vm239, %v497, %v500
    %v509 = vsel %vm257, %v508, %v503
    %v510 = vsel %vm275, %v509, %v506
    %v511 = vsub.f32 %v510, %v481
    %v512 = vsub.f32 %v508, %v485
    %v513 = vand.u32 2147483647, %v511
    %v514 = vand.u32 2147483647, %v512
    %v515 = vmul.f32 %v513, 2.5
    %v516 = vmul.f32 %v514, 2.5
    %v517 = vsub.f32 1.0, %v515
    %v518 = vsub.f32 1.0, %v516
    %v519 = vmax.f32 %v517, 0.0
    %v520 = vmax.f32 %v518, 0.0
    %v521 = vld [vmem:[%s5] sm:$0xff]
    %v522 = vld [vmem:[%s5 + $0x8] sm:$0xff]
    %v523 = vld [vmem:[%s5 + $0x10] sm:$0xff]
    %v524 = vld [vmem:[%s5 + $0x18] sm:$0xff]
    %v525 = vld [vmem:[%s5 + $0x20] sm:$0xff]
    %v526 = vld [vmem:[%s5 + $0x28] sm:$0xff]
    %v527 = vld [vmem:[%s5 + $0x30] sm:$0xff]
    %v528 = vld [vmem:[%s5 + $0x38] sm:$0xff]
    %v529 = vld [vmem:[%s5 + $0x40] sm:$0xff]
    %v530 = vld [vmem:[%s5 + $0x48] sm:$0xff]
    %v531 = vld [vmem:[%s5 + $0x50] sm:$0xff]
    %v532 = vld [vmem:[%s5 + $0x58] sm:$0xff]
    %v533 = vld [vmem:[%s5 + $0x60] sm:$0xff]
    %v534 = vld [vmem:[%s5 + $0x68] sm:$0xff]
    %v535 = vld [vmem:[%s5 + $0x70] sm:$0xff]
    %v536 = vld [vmem:[%s5 + $0x78] sm:$0xff]
    %v537 = vld [vmem:[%s5 + $0x80] sm:$0xff]
    %v538 = vld [vmem:[%s5 + $0x88] sm:$0xff]
    %v539 = vld [vmem:[%s5 + $0x90] sm:$0xff]
    %v540 = vld [vmem:[%s5 + $0x98] sm:$0xff]
    %v541 = vld [vmem:[%s5 + $0xa0] sm:$0xff]
    %v542 = vld [vmem:[%s5 + $0xa8] sm:$0xff]
    %v543 = vld [vmem:[%s5 + $0xb0] sm:$0xff]
    %v544 = vld [vmem:[%s5 + $0xb8] sm:$0xff]
    %v546 = vsel %vm257, %v520, 0
    %548 = vmatprep.subr.mxu0 0.0
    %549 = vmatpush1.msra.mxu0 %v521
    %550 = vmatprep.subr.mxu0 0.0
    %551 = vmatpush1.msra.mxu0 %v522
    %552 = vmatprep.subr.mxu0 0.0
    %553 = vmatpush1.msra.mxu0 %v523
    %554 = vmatprep.subr.mxu0 0.0
    %555 = vmatpush1.msra.mxu0 %v524
    %556 = vmatprep.subr.mxu0 0.0
    %557 = vmatpush1.msra.mxu0 %v525
    %558 = vmatprep.subr.mxu0 0.0
    %559 = vmatpush1.msra.mxu0 %v526
    %560 = vmatprep.subr.mxu0 0.0
    %561 = vmatpush1.msra.mxu0 %v527
    %562 = vmatprep.subr.mxu0 0.0
    %563 = vmatpush1.msra.mxu0 %v528
    %564 = vmatprep.subr.mxu0 0.0
    %565 = vmatpush1.msra.mxu0 %v529
    %566 = vmatprep.subr.mxu0 0.0
    %567 = vmatpush1.msra.mxu0 %v530
    %568 = vmatprep.subr.mxu0 0.0
    %569 = vmatpush1.msra.mxu0 %v531
    %570 = vmatprep.subr.mxu0 0.0
    %571 = vmatpush1.msra.mxu0 %v532
    %572 = vmatprep.subr.mxu0 0.0
    %573 = vmatpush1.msra.mxu0 %v533
    %574 = vmatprep.subr.mxu0 0.0
    %575 = vmatpush1.msra.mxu0 %v534
    %576 = vmatprep.subr.mxu0 0.0
    %577 = vmatpush1.msra.mxu0 %v535
    %578 = vmatprep.subr.mxu0 0.0
    %579 = vmatpush1.msra.mxu0 %v536
    %580 = vmatprep.subr.mxu0 0.0
    %581 = vmatpush1.msra.mxu0 %v537
    %582 = vmatprep.subr.mxu0 0.0
    %583 = vmatpush1.msra.mxu0 %v538
    %584 = vmatprep.subr.mxu0 0.0
    %585 = vmatpush1.msra.mxu0 %v539
    %586 = vmatprep.subr.mxu0 0.0
    %587 = vmatpush1.msra.mxu0 %v540
    %588 = vmatprep.subr.mxu0 0.0
    %589 = vmatpush1.msra.mxu0 %v541
    %590 = vmatprep.subr.mxu0 0.0
    %591 = vmatpush1.msra.mxu0 %v542
    %592 = vmatprep.subr.mxu0 0.0
    %593 = vmatpush1.msra.mxu0 %v543
    %594 = vmatprep.subr.mxu0 0.0
    %595 = vmatpush1.msra.mxu0 %v544
    %596 = vmatprep.subr.mxu0 0.0
    %597 = vmatpush1.msra.mxu0 0.0
    %598 = vmatprep.subr.mxu0 0.0
    %599 = vmatpush1.msra.mxu0 0.0
    %600 = vmatprep.subr.mxu0 0.0
    %601 = vmatpush1.msra.mxu0 0.0
    %602 = vmatprep.subr.mxu0 0.0
    %603 = vmatpush1.msra.mxu0 0.0
    %604 = vmatprep.subr.mxu0 0.0
    %605 = vmatpush1.msra.mxu0 0.0
    %606 = vmatprep.subr.mxu0 0.0
    %607 = vmatpush1.msra.mxu0 0.0
    %608 = vmatprep.subr.mxu0 0.0
    %609 = vmatpush1.msra.mxu0 0.0
    %610 = vmatprep.subr.mxu0 0.0
    %611 = vmatpush1.msra.mxu0 0.0
    %612 = vmatprep.mubr.f32.mxu0 %v546
    %613 = vmatmul.mubr.f32.gmra.mrb[0].mxu0 %v519
    %v614 = vpop.f32.mrb[0].mxu0
    %v615 = vadd.f32 %v493, %v614
    %v616 = vpop.f32.mrb[0].mxu0
    %617 = vdwg.mxu0
    %v618 = vtanh.pop %v615
    %v619 = vadd.f32 %v468, %v618
    %v620 = vtanh.pop %v619
    %v621 = vmax.f32 %v620, -1.0
    %v622 = vmin.f32 %v621, 1.0
    %624 = vrot.lane.b32.xlu0 %v622, 32
    %v625 = vpop.permute.xlu0 %624
    %627 = vrot.lane.b32.xlu0 %v622, 64
    %v628 = vpop.permute.xlu0 %627
    %630 = vrot.lane.b32.xlu0 %v622, 96
    %v631 = vpop.permute.xlu0 %630
    %v633 = vsel %vm239, %v622, %v625
    %v634 = vsel %vm257, %v633, %v628
    %v635 = vsel %vm275, %v634, %v631
    %v636 = vsub.f32 %v635, %v481
    %v637 = vsub.f32 %v633, %v485
    %v638 = vand.u32 2147483647, %v636
    %v639 = vand.u32 2147483647, %v637
    %v640 = vmul.f32 %v638, 2.5
    %v641 = vmul.f32 %v639, 2.5
    %v642 = vsub.f32 1.0, %v640
    %v643 = vsub.f32 1.0, %v641
    %v644 = vmax.f32 %v642, 0.0
    %v645 = vmax.f32 %v643, 0.0
    %v647 = vsel %vm257, %v645, 0
    %649 = vmatprep.subr.mxu0 0.0
    %650 = vmatpush1.msra.mxu0 %v521
    %651 = vmatprep.subr.mxu0 0.0
    %652 = vmatpush1.msra.mxu0 %v522
    %653 = vmatprep.subr.mxu0 0.0
    %654 = vmatpush1.msra.mxu0 %v523
    %655 = vmatprep.subr.mxu0 0.0
    %656 = vmatpush1.msra.mxu0 %v524
    %657 = vmatprep.subr.mxu0 0.0
    %658 = vmatpush1.msra.mxu0 %v525
    %659 = vmatprep.subr.mxu0 0.0
    %660 = vmatpush1.msra.mxu0 %v526
    %661 = vmatprep.subr.mxu0 0.0
    %662 = vmatpush1.msra.mxu0 %v527
    %663 = vmatprep.subr.mxu0 0.0
    %664 = vmatpush1.msra.mxu0 %v528
    %665 = vmatprep.subr.mxu0 0.0
    %666 = vmatpush1.msra.mxu0 %v529
    %667 = vmatprep.subr.mxu0 0.0
    %668 = vmatpush1.msra.mxu0 %v530
    %669 = vmatprep.subr.mxu0 0.0
    %670 = vmatpush1.msra.mxu0 %v531
    %671 = vmatprep.subr.mxu0 0.0
    %672 = vmatpush1.msra.mxu0 %v532
    %673 = vmatprep.subr.mxu0 0.0
    %674 = vmatpush1.msra.mxu0 %v533
    %675 = vmatprep.subr.mxu0 0.0
    %676 = vmatpush1.msra.mxu0 %v534
    %677 = vmatprep.subr.mxu0 0.0
    %678 = vmatpush1.msra.mxu0 %v535
    %679 = vmatprep.subr.mxu0 0.0
    %680 = vmatpush1.msra.mxu0 %v536
    %681 = vmatprep.subr.mxu0 0.0
    %682 = vmatpush1.msra.mxu0 %v537
    %683 = vmatprep.subr.mxu0 0.0
    %684 = vmatpush1.msra.mxu0 %v538
    %685 = vmatprep.subr.mxu0 0.0
    %686 = vmatpush1.msra.mxu0 %v539
    %687 = vmatprep.subr.mxu0 0.0
    %688 = vmatpush1.msra.mxu0 %v540
    %689 = vmatprep.subr.mxu0 0.0
    %690 = vmatpush1.msra.mxu0 %v541
    %691 = vmatprep.subr.mxu0 0.0
    %692 = vmatpush1.msra.mxu0 %v542
    %693 = vmatprep.subr.mxu0 0.0
    %694 = vmatpush1.msra.mxu0 %v543
    %695 = vmatprep.subr.mxu0 0.0
    %696 = vmatpush1.msra.mxu0 %v544
    %697 = vmatprep.subr.mxu0 0.0
    %698 = vmatpush1.msra.mxu0 0.0
    %699 = vmatprep.subr.mxu0 0.0
    %700 = vmatpush1.msra.mxu0 0.0
    %701 = vmatprep.subr.mxu0 0.0
    %702 = vmatpush1.msra.mxu0 0.0
    %703 = vmatprep.subr.mxu0 0.0
    %704 = vmatpush1.msra.mxu0 0.0
    %705 = vmatprep.subr.mxu0 0.0
    %706 = vmatpush1.msra.mxu0 0.0
    %707 = vmatprep.subr.mxu0 0.0
    %708 = vmatpush1.msra.mxu0 0.0
    %709 = vmatprep.subr.mxu0 0.0
    %710 = vmatpush1.msra.mxu0 0.0
    %711 = vmatprep.subr.mxu0 0.0
    %712 = vmatpush1.msra.mxu0 0.0
    %713 = vmatprep.mubr.f32.mxu0 %v647
    %714 = vmatmul.mubr.f32.gmra.mrb[0].mxu0 %v644
    %v715 = vpop.f32.mrb[0].mxu0
    %v716 = vadd.f32 %v493, %v715
    %v717 = vpop.f32.mrb[0].mxu0
    %718 = vdwg.mxu0
    %v719 = vtanh.pop %v716
    %v720 = vadd.f32 %v469, %v719
    %v721 = vtanh.pop %v720
    %v722 = vmax.f32 %v721, -1.0
    %v723 = vmin.f32 %v722, 1.0
    %725 = vrot.lane.b32.xlu0 %v723, 32
    %v726 = vpop.permute.xlu0 %725
    %728 = vrot.lane.b32.xlu0 %v723, 64
    %v729 = vpop.permute.xlu0 %728
    %731 = vrot.lane.b32.xlu0 %v723, 96
    %v732 = vpop.permute.xlu0 %731
    %v734 = vsel %vm239, %v723, %v726
    %v735 = vsel %vm257, %v734, %v729
    %v736 = vsel %vm275, %v735, %v732
    %v737 = vsub.f32 %v736, %v481
    %v738 = vsub.f32 %v734, %v485
    %v739 = vand.u32 2147483647, %v737
    %v740 = vand.u32 2147483647, %v738
    %v741 = vmul.f32 %v739, 2.5
    %v742 = vmul.f32 %v740, 2.5
    %v743 = vsub.f32 1.0, %v741
    %v744 = vsub.f32 1.0, %v742
    %v745 = vmax.f32 %v743, 0.0
    %v746 = vmax.f32 %v744, 0.0
    %v748 = vsel %vm257, %v746, 0
    %750 = vmatprep.subr.mxu0 0.0
    %751 = vmatpush1.msra.mxu0 %v521
    %752 = vmatprep.subr.mxu0 0.0
    %753 = vmatpush1.msra.mxu0 %v522
    %754 = vmatprep.subr.mxu0 0.0
    %755 = vmatpush1.msra.mxu0 %v523
    %756 = vmatprep.subr.mxu0 0.0
    %757 = vmatpush1.msra.mxu0 %v524
    %758 = vmatprep.subr.mxu0 0.0
    %759 = vmatpush1.msra.mxu0 %v525
    %760 = vmatprep.subr.mxu0 0.0
    %761 = vmatpush1.msra.mxu0 %v526
    %762 = vmatprep.subr.mxu0 0.0
    %763 = vmatpush1.msra.mxu0 %v527
    %764 = vmatprep.subr.mxu0 0.0
    %765 = vmatpush1.msra.mxu0 %v528
    %766 = vmatprep.subr.mxu0 0.0
    %767 = vmatpush1.msra.mxu0 %v529
    %768 = vmatprep.subr.mxu0 0.0
    %769 = vmatpush1.msra.mxu0 %v530
    %770 = vmatprep.subr.mxu0 0.0
    %771 = vmatpush1.msra.mxu0 %v531
    %772 = vmatprep.subr.mxu0 0.0
    %773 = vmatpush1.msra.mxu0 %v532
    %774 = vmatprep.subr.mxu0 0.0
    %775 = vmatpush1.msra.mxu0 %v533
    %776 = vmatprep.subr.mxu0 0.0
    %777 = vmatpush1.msra.mxu0 %v534
    %778 = vmatprep.subr.mxu0 0.0
    %779 = vmatpush1.msra.mxu0 %v535
    %780 = vmatprep.subr.mxu0 0.0
    %781 = vmatpush1.msra.mxu0 %v536
    %782 = vmatprep.subr.mxu0 0.0
    %783 = vmatpush1.msra.mxu0 %v537
    %784 = vmatprep.subr.mxu0 0.0
    %785 = vmatpush1.msra.mxu0 %v538
    %786 = vmatprep.subr.mxu0 0.0
    %787 = vmatpush1.msra.mxu0 %v539
    %788 = vmatprep.subr.mxu0 0.0
    %789 = vmatpush1.msra.mxu0 %v540
    %790 = vmatprep.subr.mxu0 0.0
    %791 = vmatpush1.msra.mxu0 %v541
    %792 = vmatprep.subr.mxu0 0.0
    %793 = vmatpush1.msra.mxu0 %v542
    %794 = vmatprep.subr.mxu0 0.0
    %795 = vmatpush1.msra.mxu0 %v543
    %796 = vmatprep.subr.mxu0 0.0
    %797 = vmatpush1.msra.mxu0 %v544
    %798 = vmatprep.subr.mxu0 0.0
    %799 = vmatpush1.msra.mxu0 0.0
    %800 = vmatprep.subr.mxu0 0.0
    %801 = vmatpush1.msra.mxu0 0.0
    %802 = vmatprep.subr.mxu0 0.0
    %803 = vmatpush1.msra.mxu0 0.0
    %804 = vmatprep.subr.mxu0 0.0
    %805 = vmatpush1.msra.mxu0 0.0
    %806 = vmatprep.subr.mxu0 0.0
    %807 = vmatpush1.msra.mxu0 0.0
    %808 = vmatprep.subr.mxu0 0.0
    %809 = vmatpush1.msra.mxu0 0.0
    %810 = vmatprep.subr.mxu0 0.0
    %811 = vmatpush1.msra.mxu0 0.0
    %812 = vmatprep.subr.mxu0 0.0
    %813 = vmatpush1.msra.mxu0 0.0
    %814 = vmatprep.mubr.f32.mxu0 %v748
    %815 = vmatmul.mubr.f32.gmra.mrb[0].mxu0 %v745
    %v816 = vpop.f32.mrb[0].mxu0
    %v817 = vadd.f32 %v493, %v816
    %v818 = vpop.f32.mrb[0].mxu0
    %819 = vdwg.mxu0
    %v820 = vtanh.pop %v817
    %v821 = vadd.f32 %v470, %v820
    %v822 = vtanh.pop %v821
    %v823 = vmax.f32 %v822, -1.0
    %v824 = vmin.f32 %v823, 1.0
    %826 = vrot.lane.b32.xlu0 %v824, 32
    %v827 = vpop.permute.xlu0 %826
    %829 = vrot.lane.b32.xlu0 %v824, 64
    %v830 = vpop.permute.xlu0 %829
    %832 = vrot.lane.b32.xlu0 %v824, 96
    %v833 = vpop.permute.xlu0 %832
    %v835 = vsel %vm239, %v824, %v827
    %v836 = vsel %vm257, %v835, %v830
    %v837 = vsel %vm275, %v836, %v833
    %v838 = vsub.f32 %v837, %v481
    %v839 = vsub.f32 %v835, %v485
    %v840 = vand.u32 2147483647, %v838
    %v841 = vand.u32 2147483647, %v839
    %v842 = vmul.f32 %v840, 2.5
    %v843 = vmul.f32 %v841, 2.5
    %v844 = vsub.f32 1.0, %v842
    %v845 = vsub.f32 1.0, %v843
    %v846 = vmax.f32 %v844, 0.0
    %v847 = vmax.f32 %v845, 0.0
    %v849 = vsel %vm257, %v847, 0
    %851 = vmatprep.subr.mxu0 0.0
    %852 = vmatpush1.msra.mxu0 %v521
    %853 = vmatprep.subr.mxu0 0.0
    %854 = vmatpush1.msra.mxu0 %v522
    %855 = vmatprep.subr.mxu0 0.0
    %856 = vmatpush1.msra.mxu0 %v523
    %857 = vmatprep.subr.mxu0 0.0
    %858 = vmatpush1.msra.mxu0 %v524
    %859 = vmatprep.subr.mxu0 0.0
    %860 = vmatpush1.msra.mxu0 %v525
    %861 = vmatprep.subr.mxu0 0.0
    %862 = vmatpush1.msra.mxu0 %v526
    %863 = vmatprep.subr.mxu0 0.0
    %864 = vmatpush1.msra.mxu0 %v527
    %865 = vmatprep.subr.mxu0 0.0
    %866 = vmatpush1.msra.mxu0 %v528
    %867 = vmatprep.subr.mxu0 0.0
    %868 = vmatpush1.msra.mxu0 %v529
    %869 = vmatprep.subr.mxu0 0.0
    %870 = vmatpush1.msra.mxu0 %v530
    %871 = vmatprep.subr.mxu0 0.0
    %872 = vmatpush1.msra.mxu0 %v531
    %873 = vmatprep.subr.mxu0 0.0
    %874 = vmatpush1.msra.mxu0 %v532
    %875 = vmatprep.subr.mxu0 0.0
    %876 = vmatpush1.msra.mxu0 %v533
    %877 = vmatprep.subr.mxu0 0.0
    %878 = vmatpush1.msra.mxu0 %v534
    %879 = vmatprep.subr.mxu0 0.0
    %880 = vmatpush1.msra.mxu0 %v535
    %881 = vmatprep.subr.mxu0 0.0
    %882 = vmatpush1.msra.mxu0 %v536
    %883 = vmatprep.subr.mxu0 0.0
    %884 = vmatpush1.msra.mxu0 %v537
    %885 = vmatprep.subr.mxu0 0.0
    %886 = vmatpush1.msra.mxu0 %v538
    %887 = vmatprep.subr.mxu0 0.0
    %888 = vmatpush1.msra.mxu0 %v539
    %889 = vmatprep.subr.mxu0 0.0
    %890 = vmatpush1.msra.mxu0 %v540
    %891 = vmatprep.subr.mxu0 0.0
    %892 = vmatpush1.msra.mxu0 %v541
    %893 = vmatprep.subr.mxu0 0.0
    %894 = vmatpush1.msra.mxu0 %v542
    %895 = vmatprep.subr.mxu0 0.0
    %896 = vmatpush1.msra.mxu0 %v543
    %897 = vmatprep.subr.mxu0 0.0
    %898 = vmatpush1.msra.mxu0 %v544
    %899 = vmatprep.subr.mxu0 0.0
    %900 = vmatpush1.msra.mxu0 0.0
    %901 = vmatprep.subr.mxu0 0.0
    %902 = vmatpush1.msra.mxu0 0.0
    %903 = vmatprep.subr.mxu0 0.0
    %904 = vmatpush1.msra.mxu0 0.0
    %905 = vmatprep.subr.mxu0 0.0
    %906 = vmatpush1.msra.mxu0 0.0
    %907 = vmatprep.subr.mxu0 0.0
    %908 = vmatpush1.msra.mxu0 0.0
    %909 = vmatprep.subr.mxu0 0.0
    %910 = vmatpush1.msra.mxu0 0.0
    %911 = vmatprep.subr.mxu0 0.0
    %912 = vmatpush1.msra.mxu0 0.0
    %913 = vmatprep.subr.mxu0 0.0
    %914 = vmatpush1.msra.mxu0 0.0
    %915 = vmatprep.mubr.f32.mxu0 %v849
    %916 = vmatmul.mubr.f32.gmra.mrb[0].mxu0 %v846
    %v917 = vpop.f32.mrb[0].mxu0
    %v918 = vadd.f32 %v493, %v917
    %v919 = vpop.f32.mrb[0].mxu0
    %920 = vdwg.mxu0
    %v921 = vtanh.pop %v918
    %v922 = vadd.f32 %v471, %v921
    %v923 = vtanh.pop %v922
    %v924 = vmax.f32 %v923, -1.0
    %v925 = vmin.f32 %v924, 1.0
    %927 = vrot.lane.b32.xlu0 %v925, 32
    %v928 = vpop.permute.xlu0 %927
    %930 = vrot.lane.b32.xlu0 %v925, 64
    %v931 = vpop.permute.xlu0 %930
    %933 = vrot.lane.b32.xlu0 %v925, 96
    %v934 = vpop.permute.xlu0 %933
    %v936 = vsel %vm239, %v925, %v928
    %v937 = vsel %vm257, %v936, %v931
    %v938 = vsel %vm275, %v937, %v934
    %v939 = vsub.f32 %v938, %v481
    %v940 = vsub.f32 %v936, %v485
    %v941 = vand.u32 2147483647, %v939
    %v942 = vand.u32 2147483647, %v940
    %v943 = vmul.f32 %v941, 2.5
    %v944 = vmul.f32 %v942, 2.5
    %v945 = vsub.f32 1.0, %v943
    %v946 = vsub.f32 1.0, %v944
    %v947 = vmax.f32 %v945, 0.0
    %v948 = vmax.f32 %v946, 0.0
    %v950 = vsel %vm257, %v948, 0
    %952 = vmatprep.subr.mxu0 0.0
    %953 = vmatpush1.msra.mxu0 %v521
    %954 = vmatprep.subr.mxu0 0.0
    %955 = vmatpush1.msra.mxu0 %v522
    %956 = vmatprep.subr.mxu0 0.0
    %957 = vmatpush1.msra.mxu0 %v523
    %958 = vmatprep.subr.mxu0 0.0
    %959 = vmatpush1.msra.mxu0 %v524
    %960 = vmatprep.subr.mxu0 0.0
    %961 = vmatpush1.msra.mxu0 %v525
    %962 = vmatprep.subr.mxu0 0.0
    %963 = vmatpush1.msra.mxu0 %v526
    %964 = vmatprep.subr.mxu0 0.0
    %965 = vmatpush1.msra.mxu0 %v527
    %966 = vmatprep.subr.mxu0 0.0
    %967 = vmatpush1.msra.mxu0 %v528
    %968 = vmatprep.subr.mxu0 0.0
    %969 = vmatpush1.msra.mxu0 %v529
    %970 = vmatprep.subr.mxu0 0.0
    %971 = vmatpush1.msra.mxu0 %v530
    %972 = vmatprep.subr.mxu0 0.0
    %973 = vmatpush1.msra.mxu0 %v531
    %974 = vmatprep.subr.mxu0 0.0
    %975 = vmatpush1.msra.mxu0 %v532
    %976 = vmatprep.subr.mxu0 0.0
    %977 = vmatpush1.msra.mxu0 %v533
    %978 = vmatprep.subr.mxu0 0.0
    %979 = vmatpush1.msra.mxu0 %v534
    %980 = vmatprep.subr.mxu0 0.0
    %981 = vmatpush1.msra.mxu0 %v535
    %982 = vmatprep.subr.mxu0 0.0
    %983 = vmatpush1.msra.mxu0 %v536
    %984 = vmatprep.subr.mxu0 0.0
    %985 = vmatpush1.msra.mxu0 %v537
    %986 = vmatprep.subr.mxu0 0.0
    %987 = vmatpush1.msra.mxu0 %v538
    %988 = vmatprep.subr.mxu0 0.0
    %989 = vmatpush1.msra.mxu0 %v539
    %990 = vmatprep.subr.mxu0 0.0
    %991 = vmatpush1.msra.mxu0 %v540
    %992 = vmatprep.subr.mxu0 0.0
    %993 = vmatpush1.msra.mxu0 %v541
    %994 = vmatprep.subr.mxu0 0.0
    %995 = vmatpush1.msra.mxu0 %v542
    %996 = vmatprep.subr.mxu0 0.0
    %997 = vmatpush1.msra.mxu0 %v543
    %998 = vmatprep.subr.mxu0 0.0
    %999 = vmatpush1.msra.mxu0 %v544
    %1000 = vmatprep.subr.mxu0 0.0
    %1001 = vmatpush1.msra.mxu0 0.0
    %1002 = vmatprep.subr.mxu0 0.0
    %1003 = vmatpush1.msra.mxu0 0.0
    %1004 = vmatprep.subr.mxu0 0.0
    %1005 = vmatpush1.msra.mxu0 0.0
    %1006 = vmatprep.subr.mxu0 0.0
    %1007 = vmatpush1.msra.mxu0 0.0
    %1008 = vmatprep.subr.mxu0 0.0
    %1009 = vmatpush1.msra.mxu0 0.0
    %1010 = vmatprep.subr.mxu0 0.0
    %1011 = vmatpush1.msra.mxu0 0.0
    %1012 = vmatprep.subr.mxu0 0.0
    %1013 = vmatpush1.msra.mxu0 0.0
    %1014 = vmatprep.subr.mxu0 0.0
    %1015 = vmatpush1.msra.mxu0 0.0
    %1016 = vmatprep.mubr.f32.mxu0 %v950
    %1017 = vmatmul.mubr.f32.gmra.mrb[0].mxu0 %v947
    %v1018 = vpop.f32.mrb[0].mxu0
    %v1019 = vadd.f32 %v493, %v1018
    %v1020 = vpop.f32.mrb[0].mxu0
    %1021 = vdwg.mxu0
    %v1022 = vtanh.pop %v1019
    %v1023 = vadd.f32 %v472, %v1022
    %v1024 = vtanh.pop %v1023
    %v1025 = vmax.f32 %v1024, -1.0
    %v1026 = vmin.f32 %v1025, 1.0
    %1028 = vrot.lane.b32.xlu0 %v1026, 32
    %v1029 = vpop.permute.xlu0 %1028
    %1031 = vrot.lane.b32.xlu0 %v1026, 64
    %v1032 = vpop.permute.xlu0 %1031
    %1034 = vrot.lane.b32.xlu0 %v1026, 96
    %v1035 = vpop.permute.xlu0 %1034
    %v1037 = vsel %vm239, %v1026, %v1029
    %v1038 = vsel %vm257, %v1037, %v1032
    %v1039 = vsel %vm275, %v1038, %v1035
    %v1040 = vsub.f32 %v1039, %v481
    %v1041 = vsub.f32 %v1037, %v485
    %v1042 = vand.u32 2147483647, %v1040
    %v1043 = vand.u32 2147483647, %v1041
    %v1044 = vmul.f32 %v1042, 2.5
    %v1045 = vmul.f32 %v1043, 2.5
    %v1046 = vsub.f32 1.0, %v1044
    %v1047 = vsub.f32 1.0, %v1045
    %v1048 = vmax.f32 %v1046, 0.0
    %v1049 = vmax.f32 %v1047, 0.0
    %v1051 = vsel %vm257, %v1049, 0
    %1053 = vmatprep.subr.mxu0 0.0
    %1054 = vmatpush1.msra.mxu0 %v521
    %1055 = vmatprep.subr.mxu0 0.0
    %1056 = vmatpush1.msra.mxu0 %v522
    %1057 = vmatprep.subr.mxu0 0.0
    %1058 = vmatpush1.msra.mxu0 %v523
    %1059 = vmatprep.subr.mxu0 0.0
    %1060 = vmatpush1.msra.mxu0 %v524
    %1061 = vmatprep.subr.mxu0 0.0
    %1062 = vmatpush1.msra.mxu0 %v525
    %1063 = vmatprep.subr.mxu0 0.0
    %1064 = vmatpush1.msra.mxu0 %v526
    %1065 = vmatprep.subr.mxu0 0.0
    %1066 = vmatpush1.msra.mxu0 %v527
    %1067 = vmatprep.subr.mxu0 0.0
    %1068 = vmatpush1.msra.mxu0 %v528
    %1069 = vmatprep.subr.mxu0 0.0
    %1070 = vmatpush1.msra.mxu0 %v529
    %1071 = vmatprep.subr.mxu0 0.0
    %1072 = vmatpush1.msra.mxu0 %v530
    %1073 = vmatprep.subr.mxu0 0.0
    %1074 = vmatpush1.msra.mxu0 %v531
    %1075 = vmatprep.subr.mxu0 0.0
    %1076 = vmatpush1.msra.mxu0 %v532
    %1077 = vmatprep.subr.mxu0 0.0
    %1078 = vmatpush1.msra.mxu0 %v533
    %1079 = vmatprep.subr.mxu0 0.0
    %1080 = vmatpush1.msra.mxu0 %v534
    %1081 = vmatprep.subr.mxu0 0.0
    %1082 = vmatpush1.msra.mxu0 %v535
    %1083 = vmatprep.subr.mxu0 0.0
    %1084 = vmatpush1.msra.mxu0 %v536
    %1085 = vmatprep.subr.mxu0 0.0
    %1086 = vmatpush1.msra.mxu0 %v537
    %1087 = vmatprep.subr.mxu0 0.0
    %1088 = vmatpush1.msra.mxu0 %v538
    %1089 = vmatprep.subr.mxu0 0.0
    %1090 = vmatpush1.msra.mxu0 %v539
    %1091 = vmatprep.subr.mxu0 0.0
    %1092 = vmatpush1.msra.mxu0 %v540
    %1093 = vmatprep.subr.mxu0 0.0
    %1094 = vmatpush1.msra.mxu0 %v541
    %1095 = vmatprep.subr.mxu0 0.0
    %1096 = vmatpush1.msra.mxu0 %v542
    %1097 = vmatprep.subr.mxu0 0.0
    %1098 = vmatpush1.msra.mxu0 %v543
    %1099 = vmatprep.subr.mxu0 0.0
    %1100 = vmatpush1.msra.mxu0 %v544
    %1101 = vmatprep.subr.mxu0 0.0
    %1102 = vmatpush1.msra.mxu0 0.0
    %1103 = vmatprep.subr.mxu0 0.0
    %1104 = vmatpush1.msra.mxu0 0.0
    %1105 = vmatprep.subr.mxu0 0.0
    %1106 = vmatpush1.msra.mxu0 0.0
    %1107 = vmatprep.subr.mxu0 0.0
    %1108 = vmatpush1.msra.mxu0 0.0
    %1109 = vmatprep.subr.mxu0 0.0
    %1110 = vmatpush1.msra.mxu0 0.0
    %1111 = vmatprep.subr.mxu0 0.0
    %1112 = vmatpush1.msra.mxu0 0.0
    %1113 = vmatprep.subr.mxu0 0.0
    %1114 = vmatpush1.msra.mxu0 0.0
    %1115 = vmatprep.subr.mxu0 0.0
    %1116 = vmatpush1.msra.mxu0 0.0
    %1117 = vmatprep.mubr.f32.mxu0 %v1051
    %1118 = vmatmul.mubr.f32.gmra.mrb[0].mxu0 %v1048
    %v1119 = vpop.f32.mrb[0].mxu0
    %v1120 = vadd.f32 %v493, %v1119
    %v1121 = vpop.f32.mrb[0].mxu0
    %1122 = vdwg.mxu0
    %v1123 = vtanh.pop %v1120
    %v1124 = vadd.f32 %v473, %v1123
    %v1125 = vtanh.pop %v1124
    %v1126 = vmax.f32 %v1125, -1.0
    %v1127 = vmin.f32 %v1126, 1.0
    %1129 = vrot.lane.b32.xlu0 %v1127, 32
    %v1130 = vpop.permute.xlu0 %1129
    %1132 = vrot.lane.b32.xlu0 %v1127, 64
    %v1133 = vpop.permute.xlu0 %1132
    %1135 = vrot.lane.b32.xlu0 %v1127, 96
    %v1136 = vpop.permute.xlu0 %1135
    %v1138 = vsel %vm239, %v1127, %v1130
    %v1139 = vsel %vm257, %v1138, %v1133
    %v1140 = vsel %vm275, %v1139, %v1136
    %v1141 = vsub.f32 %v1140, %v481
    %v1142 = vsub.f32 %v1138, %v485
    %v1143 = vand.u32 2147483647, %v1141
    %v1144 = vand.u32 2147483647, %v1142
    %v1145 = vmul.f32 %v1143, 2.5
    %v1146 = vmul.f32 %v1144, 2.5
    %v1147 = vsub.f32 1.0, %v1145
    %v1148 = vsub.f32 1.0, %v1146
    %v1149 = vmax.f32 %v1147, 0.0
    %v1150 = vmax.f32 %v1148, 0.0
    %v1152 = vsel %vm257, %v1150, 0
    %1154 = vmatprep.subr.mxu0 0.0
    %1155 = vmatpush1.msra.mxu0 %v521
    %1156 = vmatprep.subr.mxu0 0.0
    %1157 = vmatpush1.msra.mxu0 %v522
    %1158 = vmatprep.subr.mxu0 0.0
    %1159 = vmatpush1.msra.mxu0 %v523
    %1160 = vmatprep.subr.mxu0 0.0
    %1161 = vmatpush1.msra.mxu0 %v524
    %1162 = vmatprep.subr.mxu0 0.0
    %1163 = vmatpush1.msra.mxu0 %v525
    %1164 = vmatprep.subr.mxu0 0.0
    %1165 = vmatpush1.msra.mxu0 %v526
    %1166 = vmatprep.subr.mxu0 0.0
    %1167 = vmatpush1.msra.mxu0 %v527
    %1168 = vmatprep.subr.mxu0 0.0
    %1169 = vmatpush1.msra.mxu0 %v528
    %1170 = vmatprep.subr.mxu0 0.0
    %1171 = vmatpush1.msra.mxu0 %v529
    %1172 = vmatprep.subr.mxu0 0.0
    %1173 = vmatpush1.msra.mxu0 %v530
    %1174 = vmatprep.subr.mxu0 0.0
    %1175 = vmatpush1.msra.mxu0 %v531
    %1176 = vmatprep.subr.mxu0 0.0
    %1177 = vmatpush1.msra.mxu0 %v532
    %1178 = vmatprep.subr.mxu0 0.0
    %1179 = vmatpush1.msra.mxu0 %v533
    %1180 = vmatprep.subr.mxu0 0.0
    %1181 = vmatpush1.msra.mxu0 %v534
    %1182 = vmatprep.subr.mxu0 0.0
    %1183 = vmatpush1.msra.mxu0 %v535
    %1184 = vmatprep.subr.mxu0 0.0
    %1185 = vmatpush1.msra.mxu0 %v536
    %1186 = vmatprep.subr.mxu0 0.0
    %1187 = vmatpush1.msra.mxu0 %v537
    %1188 = vmatprep.subr.mxu0 0.0
    %1189 = vmatpush1.msra.mxu0 %v538
    %1190 = vmatprep.subr.mxu0 0.0
    %1191 = vmatpush1.msra.mxu0 %v539
    %1192 = vmatprep.subr.mxu0 0.0
    %1193 = vmatpush1.msra.mxu0 %v540
    %1194 = vmatprep.subr.mxu0 0.0
    %1195 = vmatpush1.msra.mxu0 %v541
    %1196 = vmatprep.subr.mxu0 0.0
    %1197 = vmatpush1.msra.mxu0 %v542
    %1198 = vmatprep.subr.mxu0 0.0
    %1199 = vmatpush1.msra.mxu0 %v543
    %1200 = vmatprep.subr.mxu0 0.0
    %1201 = vmatpush1.msra.mxu0 %v544
    %1202 = vmatprep.subr.mxu0 0.0
    %1203 = vmatpush1.msra.mxu0 0.0
    %1204 = vmatprep.subr.mxu0 0.0
    %1205 = vmatpush1.msra.mxu0 0.0
    %1206 = vmatprep.subr.mxu0 0.0
    %1207 = vmatpush1.msra.mxu0 0.0
    %1208 = vmatprep.subr.mxu0 0.0
    %1209 = vmatpush1.msra.mxu0 0.0
    %1210 = vmatprep.subr.mxu0 0.0
    %1211 = vmatpush1.msra.mxu0 0.0
    %1212 = vmatprep.subr.mxu0 0.0
    %1213 = vmatpush1.msra.mxu0 0.0
    %1214 = vmatprep.subr.mxu0 0.0
    %1215 = vmatpush1.msra.mxu0 0.0
    %1216 = vmatprep.subr.mxu0 0.0
    %1217 = vmatpush1.msra.mxu0 0.0
    %1218 = vmatprep.mubr.f32.mxu0 %v1152
    %1219 = vmatmul.mubr.f32.gmra.mrb[0].mxu0 %v1149
    %v1220 = vpop.f32.mrb[0].mxu0
    %v1221 = vadd.f32 %v493, %v1220
    %v1222 = vpop.f32.mrb[0].mxu0
    %1223 = vdwg.mxu0
    %v1224 = vtanh.pop %v1221
    %v1225 = vadd.f32 %v474, %v1224
    %v1226 = vtanh.pop %v1225
    %v1227 = vmax.f32 %v1226, -1.0
    %v1228 = vmin.f32 %v1227, 1.0
    %1230 = vrot.lane.b32.xlu0 %v1228, 32
    %v1231 = vpop.permute.xlu0 %1230
    %1233 = vrot.lane.b32.xlu0 %v1228, 64
    %v1234 = vpop.permute.xlu0 %1233
    %1236 = vrot.lane.b32.xlu0 %v1228, 96
    %v1237 = vpop.permute.xlu0 %1236
    %v1239 = vsel %vm239, %v1228, %v1231
    %v1240 = vsel %vm257, %v1239, %v1234
    %v1241 = vsel %vm275, %v1240, %v1237
    %v1242 = vsub.f32 %v1241, %v481
    %v1243 = vsub.f32 %v1239, %v485
    %v1244 = vand.u32 2147483647, %v1242
    %v1245 = vand.u32 2147483647, %v1243
    %v1246 = vmul.f32 %v1244, 2.5
    %v1247 = vmul.f32 %v1245, 2.5
    %v1248 = vsub.f32 1.0, %v1246
    %v1249 = vsub.f32 1.0, %v1247
    %v1250 = vmax.f32 %v1248, 0.0
    %v1251 = vmax.f32 %v1249, 0.0
    %v1253 = vsel %vm257, %v1251, 0
    %1255 = vmatprep.subr.mxu0 0.0
    %1256 = vmatpush1.msra.mxu0 %v521
    %1257 = vmatprep.subr.mxu0 0.0
    %1258 = vmatpush1.msra.mxu0 %v522
    %1259 = vmatprep.subr.mxu0 0.0
    %1260 = vmatpush1.msra.mxu0 %v523
    %1261 = vmatprep.subr.mxu0 0.0
    %1262 = vmatpush1.msra.mxu0 %v524
    %1263 = vmatprep.subr.mxu0 0.0
    %1264 = vmatpush1.msra.mxu0 %v525
    %1265 = vmatprep.subr.mxu0 0.0
    %1266 = vmatpush1.msra.mxu0 %v526
    %1267 = vmatprep.subr.mxu0 0.0
    %1268 = vmatpush1.msra.mxu0 %v527
    %1269 = vmatprep.subr.mxu0 0.0
    %1270 = vmatpush1.msra.mxu0 %v528
    %1271 = vmatprep.subr.mxu0 0.0
    %1272 = vmatpush1.msra.mxu0 %v529
    %1273 = vmatprep.subr.mxu0 0.0
    %1274 = vmatpush1.msra.mxu0 %v530
    %1275 = vmatprep.subr.mxu0 0.0
    %1276 = vmatpush1.msra.mxu0 %v531
    %1277 = vmatprep.subr.mxu0 0.0
    %1278 = vmatpush1.msra.mxu0 %v532
    %1279 = vmatprep.subr.mxu0 0.0
    %1280 = vmatpush1.msra.mxu0 %v533
    %1281 = vmatprep.subr.mxu0 0.0
    %1282 = vmatpush1.msra.mxu0 %v534
    %1283 = vmatprep.subr.mxu0 0.0
    %1284 = vmatpush1.msra.mxu0 %v535
    %1285 = vmatprep.subr.mxu0 0.0
    %1286 = vmatpush1.msra.mxu0 %v536
    %1287 = vmatprep.subr.mxu0 0.0
    %1288 = vmatpush1.msra.mxu0 %v537
    %1289 = vmatprep.subr.mxu0 0.0
    %1290 = vmatpush1.msra.mxu0 %v538
    %1291 = vmatprep.subr.mxu0 0.0
    %1292 = vmatpush1.msra.mxu0 %v539
    %1293 = vmatprep.subr.mxu0 0.0
    %1294 = vmatpush1.msra.mxu0 %v540
    %1295 = vmatprep.subr.mxu0 0.0
    %1296 = vmatpush1.msra.mxu0 %v541
    %1297 = vmatprep.subr.mxu0 0.0
    %1298 = vmatpush1.msra.mxu0 %v542
    %1299 = vmatprep.subr.mxu0 0.0
    %1300 = vmatpush1.msra.mxu0 %v543
    %1301 = vmatprep.subr.mxu0 0.0
    %1302 = vmatpush1.msra.mxu0 %v544
    %1303 = vmatprep.subr.mxu0 0.0
    %1304 = vmatpush1.msra.mxu0 0.0
    %1305 = vmatprep.subr.mxu0 0.0
    %1306 = vmatpush1.msra.mxu0 0.0
    %1307 = vmatprep.subr.mxu0 0.0
    %1308 = vmatpush1.msra.mxu0 0.0
    %1309 = vmatprep.subr.mxu0 0.0
    %1310 = vmatpush1.msra.mxu0 0.0
    %1311 = vmatprep.subr.mxu0 0.0
    %1312 = vmatpush1.msra.mxu0 0.0
    %1313 = vmatprep.subr.mxu0 0.0
    %1314 = vmatpush1.msra.mxu0 0.0
    %1315 = vmatprep.subr.mxu0 0.0
    %1316 = vmatpush1.msra.mxu0 0.0
    %1317 = vmatprep.subr.mxu0 0.0
    %1318 = vmatpush1.msra.mxu0 0.0
    %1319 = vmatprep.mubr.f32.mxu0 %v1253
    %1320 = vmatmul.mubr.f32.gmra.mrb[0].mxu0 %v1250
    %v1321 = vpop.f32.mrb[0].mxu0
    %v1322 = vadd.f32 %v493, %v1321
    %v1323 = vpop.f32.mrb[0].mxu0
    %1324 = vdwg.mxu0
    %v1325 = vtanh.pop %v1322
    %v1326 = vadd.f32 %v475, %v1325
    %v1327 = vtanh.pop %v1326
    %1329 = vrot.lane.b32.xlu0 %v721, 32
    %v1330 = vpop.permute.xlu0 %1329
    %1333 = vrot.lane.b32.xlu0 %v822, 64
    %v1334 = vpop.permute.xlu0 %1333
    %1337 = vrot.lane.b32.xlu0 %v923, 96
    %v1338 = vpop.permute.xlu0 %1337
    %1341 = vrot.lane.b32.xlu0 %v1125, 32
    %v1342 = vpop.permute.xlu0 %1341
    %1345 = vrot.lane.b32.xlu0 %v1226, 64
    %v1346 = vpop.permute.xlu0 %1345
    %1349 = vrot.lane.b32.xlu0 %v1327, 96
    %v1350 = vpop.permute.xlu0 %1349
    %v1352 = vsel %vm239, %v620, %v1330
    %v1353 = vsel %vm257, %v1352, %v1334
    %v1354 = vsel %vm275, %v1353, %v1338
    %v1355 = vsel %vm239, %v1024, %v1342
    %v1356 = vsel %vm257, %v1355, %v1346
    %v1357 = vsel %vm275, %v1356, %v1350
    %1358 = vst [vmem:[#allocation2] sm:$0xff] %v1354
    %1359 = vst [vmem:[#allocation2 + $0x8] sm:$0xff] %v1357
    // Predicated region
    $region34: #{tpu_custom_call.1} parent=1 // pred_check
      _
    $region35: #{tpu_custom_call.1} parent=1 // pred_check_branch
      %1361 = sbr.rel (0) target = $region37
    $region36: #{tpu_custom_call.1} parent=1 // pred_region
      %s1363 = ssub.s32 256, 256
      %1364 = vsyncadd [#allocation3], %s1363
      %s1366 = sshll.u32 [#allocation2], 4
      %s1367 = int_to_ptr.vmem [resolvable:$true] %s1366
      %1369 = dma.vmem_to_hbm [thread:$0]  %s1367, 256, %s8, [#allocation3]
    $region37: #{tpu_custom_call.1} parent=1 // pred_fallthru
      _
    // Predicated region
    $region38: #{tpu_custom_call.1} parent=1 // pred_check
      _
    $region39: #{tpu_custom_call.1} parent=1 // pred_check_branch
      %1371 = sbr.rel (0) target = $region41
    $region40: #{tpu_custom_call.1} parent=1 // pred_region
      %1372 = dma.done [#allocation3], 256
    $region41: #{tpu_custom_call.1} parent=1 // pred_fallthru
      _
    %1373 = vsyncpa [#allocation3], 1

</llo_original>
